<compile_context>
chip_gen: v7x
topology: tpu7x:2x2x1
jax: 0.10.0
libtpu: 0.0.40
codegen_flags: <defaults>
</compile_context>

<pallas_src>
import jax
import jax.numpy as jnp
from jax.experimental import pallas as pl
from jax.experimental.pallas import tpu as pltpu

# ----- model constants (from the PyTorch module) -----
HIDDEN = 128          # hidden_size
N_MFCC = 40           # input_size
NUM_CLASSES = 26      # output_size

# ----- TPU-friendly padded sizes (zero padding, does not change the math) ---
D_PAD = 128           # 40  -> 128 input features
B_PAD = 8             # batch padded to a sublane multiple
C_PAD = 128           # 26  -> 128 fc output columns (lane-dense store)


def spelling_rnn_kernel(x_ref,        # (T*B_PAD, D_PAD)  f32
                        wih_f_ref,    # (D_PAD, 4H)       bf16
                        b_f_ref,      # (1, 4H)           f32
                        wih_b_ref,    # (D_PAD, 4H)       bf16
                        b_b_ref,      # (1, 4H)           f32
                        whh_f_ref,    # (H, 4H)           bf16
                        wfc_f_ref,    # (H, C_PAD)        f32
                        wfc_b_ref,    # (H, C_PAD)        f32
                        bfc_ref,      # (1, C_PAD)        f32
                        out_ref,      # (B_PAD, C_PAD)    f32
                        gall_ref):    # scratch (T*B_PAD, 4H) f32
    H = HIDDEN
    B = B_PAD
    T = x_ref.shape[0] // B

    # bf16 copy of x used as MXU LHS (f32 accumulation everywhere).
    x_bf16 = x_ref[...].astype(jnp.bfloat16)

    # ---- hoisted FORWARD input projection for all T steps + folded bias:
    #      one (T*B, 128) @ (128, 512) matmul, entirely off the serial path.
    gall_ref[...] = (
        jnp.dot(x_bf16, wih_f_ref[...], preferred_element_type=jnp.float32)
        + b_f_ref[...])

    def sigmoid1(v):
        # Single-EUP sigmoid: sigmoid(v) == 0.5 * tanh(0.5 v) + 0.5
        return 0.5 * jnp.tanh(0.5 * v) + 0.5

    def gate_act(g):                      # PyTorch gate order [i, f, g, o]
        i = sigmoid1(g[:, 0 * H:1 * H])
        f = sigmoid1(g[:, 1 * H:2 * H])
        gg = jnp.tanh(g[:, 2 * H:3 * H])
        o = sigmoid1(g[:, 3 * H:4 * H])
        return i, f, gg, o

    whh_f = whh_f_ref[...]                # (H, 4H) bf16, only in-loop operand

    # ---- forward direction: T recurrent steps, one bf16 matmul per step.
    # t = 0: h0 = c0 = 0, so h@whh_f and f*c vanish exactly.
    g0 = gall_ref[pl.ds(0, B), :]
    i0, _f0, gg0, o0 = gate_act(g0)
    c = i0 * gg0
    h = o0 * jnp.tanh(c)
    # T is small & static: static Python unroll -> static aligned slice starts.
    for t in range(1, T):
        g = gall_ref[pl.ds(t * B, B), :] + jnp.dot(
            h.astype(jnp.bfloat16), whh_f, preferred_element_type=jnp.float32)
        i, f, gg, o = gate_act(g)
        c = f * c + i * gg
        h = o * jnp.tanh(c)

    # ---- backward direction: only its first reverse step (t = T-1) from the
    #      zero state is observed at out[:, -1, H:]; with h0=c0=0 the h@whh_b
    #      and f*c terms vanish, so whh_b never ships to the kernel.
    gb = jnp.dot(x_bf16[(T - 1) * B:, :], wih_b_ref[...],
                 preferred_element_type=jnp.float32) + b_b_ref[...]
    i_b, _f_b, g_b, o_b = gate_act(gb)
    h_bwd = o_b * jnp.tanh(i_b * g_b)

    # ---- Dropout(0.5): identity at inference ----
    # ---- fc as two K=128 partial matmuls (no (B, 2H) lane concat); f32 ----
    out_ref[...] = (
        jnp.dot(h, wfc_f_ref[...], preferred_element_type=jnp.float32)
        + jnp.dot(h_bwd, wfc_b_ref[...], preferred_element_type=jnp.float32)
        + bfc_ref[...])


def init_params(key):
    """Deterministic init mirroring PyTorch default U(-1/sqrt(fan), 1/sqrt(fan))."""
    ks = jax.random.split(key, 10)

    def u(k, shape, bound):
        return jax.random.uniform(k, shape, jnp.float32, -bound, bound)

    bl = 1.0 / float(jnp.sqrt(HIDDEN))
    bf = 1.0 / float(jnp.sqrt(2 * HIDDEN))
    return dict(
        w_ih_f=u(ks[0], (4 * HIDDEN, N_MFCC), bl),
        w_hh_f=u(ks[1], (4 * HIDDEN, HIDDEN), bl),
        b_ih_f=u(ks[2], (4 * HIDDEN,), bl),
        b_hh_f=u(ks[3], (4 * HIDDEN,), bl),
        w_ih_b=u(ks[4], (4 * HIDDEN, N_MFCC), bl),
        w_hh_b=u(ks[5], (4 * HIDDEN, HIDDEN), bl),
        b_ih_b=u(ks[6], (4 * HIDDEN,), bl),
        b_hh_b=u(ks[7], (4 * HIDDEN,), bl),
        w_fc=u(ks[8], (NUM_CLASSES, 2 * HIDDEN), bf),
        b_fc=u(ks[9], (NUM_CLASSES,), bf),
    )


def pack_params(p):
    """One-time packing of PyTorch-layout weights into kernel layout.

    Call this at model-load time; the per-call forward only touches x.
    """
    H = HIDDEN

    def pack_wih(w_ih):   # (4H, N_MFCC) -> (D_PAD, 4H) bf16, zero-padded rows
        w = jnp.zeros((D_PAD, 4 * H), jnp.float32).at[:N_MFCC].set(w_ih.T)
        return w.astype(jnp.bfloat16)

    wfc_t = p["w_fc"].T                                      # (2H, NUM_CLASSES)
    return dict(
        wih_f=pack_wih(p["w_ih_f"]),
        b_f=(p["b_ih_f"] + p["b_hh_f"]).reshape(1, 4 * H).astype(jnp.float32),
        wih_b=pack_wih(p["w_ih_b"]),
        b_b=(p["b_ih_b"] + p["b_hh_b"]).reshape(1, 4 * H).astype(jnp.float32),
        whh_f=p["w_hh_f"].T.astype(jnp.bfloat16),            # (H, 4H) bf16
        wfc_f=jnp.zeros((H, C_PAD), jnp.float32).at[:, :NUM_CLASSES].set(wfc_t[:H]),
        wfc_b=jnp.zeros((H, C_PAD), jnp.float32).at[:, :NUM_CLASSES].set(wfc_t[H:]),
        bfc=jnp.zeros((1, C_PAD), jnp.float32).at[:, :NUM_CLASSES].set(p["b_fc"]),
    )


@jax.jit
def spelling_rnn_forward(x, pp):
    """x: (B, T, N_MFCC) f32, pp: output of pack_params -> logits (B, NUM_CLASSES)."""
    B, T, D = x.shape
    assert D == N_MFCC

    # --- per-call glue (activations only): pad & transpose so that row
    #     t*B_PAD + b of the flat input holds x[b, t, :]. ---
    x_tbd = jnp.transpose(x, (1, 0, 2))                              # (T, B, D)
    x_pad = jnp.zeros((T, B_PAD, D_PAD), jnp.float32).at[:, :B, :D].set(x_tbd)
    x_flat = x_pad.reshape(T * B_PAD, D_PAD)

    out_pad = pl.pallas_call(
        spelling_rnn_kernel,
        out_shape=jax.ShapeDtypeStruct((B_PAD, C_PAD), jnp.float32),
        in_specs=[pl.BlockSpec(memory_space=pltpu.MemorySpace.VMEM)] * 9,
        out_specs=pl.BlockSpec(memory_space=pltpu.MemorySpace.VMEM),
        scratch_shapes=[pltpu.VMEM((T * B_PAD, 4 * HIDDEN), jnp.float32)],
        compiler_params=pltpu.CompilerParams(
            vmem_limit_bytes=4 * 1024 * 1024),   # real footprint < 1 MiB
    )(x_flat, pp["wih_f"], pp["b_f"], pp["wih_b"], pp["b_b"],
      pp["whh_f"], pp["wfc_f"], pp["wfc_b"], pp["bfc"])

    return out_pad[:B, :NUM_CLASSES]


def reference_forward(x, p):
    """Pure-JAX mirror of the PyTorch forward (for correctness check)."""
    B, T, _ = x.shape
    H = HIDDEN

    def cell(xt, h, c, w_ih, w_hh, b_ih, b_hh):
        gates = xt @ w_ih.T + b_ih + h @ w_hh.T + b_hh
        i = jax.nn.sigmoid(gates[:, :H])
        f = jax.nn.sigmoid(gates[:, H:2 * H])
        g = jnp.tanh(gates[:, 2 * H:3 * H])
        o = jax.nn.sigmoid(gates[:, 3 * H:])
        c = f * c + i * g
        h = o * jnp.tanh(c)
        return h, c

    h = jnp.zeros((B, H), jnp.float32)
    c = jnp.zeros((B, H), jnp.float32)
    for t in range(T):
        h, c = cell(x[:, t], h, c, p["w_ih_f"], p["w_hh_f"],
                    p["b_ih_f"], p["b_hh_f"])
    hb, _ = cell(x[:, T - 1], jnp.zeros((B, H)), jnp.zeros((B, H)),
                 p["w_ih_b"], p["w_hh_b"], p["b_ih_b"], p["b_hh_b"])
    out = jnp.concatenate([h, hb], axis=-1)
    return out @ p["w_fc"].T + p["b_fc"]


if __name__ == "__main__":
    key = jax.random.PRNGKey(0)
    k_param, k_x = jax.random.split(key)

    B, T = 2, 8
    params = init_params(k_param)
    packed = jax.tree_util.tree_map(jax.block_until_ready, pack_params(params))
    x = jax.random.normal(k_x, (B, T, N_MFCC), jnp.float32)

    out = spelling_rnn_forward(x, packed)
    out = jax.block_until_ready(out)

    ref = reference_forward(x, params)
    assert out.shape == (B, NUM_CLASSES), out.shape
    assert jnp.allclose(out, ref, rtol=1e-2, atol=1e-2), (
        f"max abs diff {jnp.max(jnp.abs(out - ref))}")

    print("KERNEL_OK")
</pallas_src>

<mosaic_0001>
module attributes {stable_mosaic.version = 11 : i64} {
  func.func @spelling_rnn_kernel(%arg0: memref<64x128xf32, #tpu.memory_space<vmem>>, %arg1: memref<128x512xbf16, #tpu.memory_space<vmem>>, %arg2: memref<1x512xf32, #tpu.memory_space<vmem>>, %arg3: memref<128x512xbf16, #tpu.memory_space<vmem>>, %arg4: memref<1x512xf32, #tpu.memory_space<vmem>>, %arg5: memref<128x512xbf16, #tpu.memory_space<vmem>>, %arg6: memref<128x128xf32, #tpu.memory_space<vmem>>, %arg7: memref<128x128xf32, #tpu.memory_space<vmem>>, %arg8: memref<1x128xf32, #tpu.memory_space<vmem>>, %arg9: memref<8x128xf32, #tpu.memory_space<vmem>>, %arg10: memref<64x512xf32, #tpu.memory_space<vmem>>) attributes {dimension_semantics = [], scalar_prefetch = 0 : i64, scratch_operands = 1 : i64, tpu.core_type = #tpu.core_type<tc>} {
    %c0 = arith.constant 0 : index
    %c0_0 = arith.constant 0 : index
    %0 = vector.load %arg0[%c0, %c0_0] : memref<64x128xf32, #tpu.memory_space<vmem>>, vector<64x128xf32>
    %1 = arith.truncf %0 : vector<64x128xf32> to vector<64x128xbf16>
    %c0_1 = arith.constant 0 : index
    %c0_2 = arith.constant 0 : index
    %2 = vector.load %arg1[%c0_1, %c0_2] : memref<128x512xbf16, #tpu.memory_space<vmem>>, vector<128x512xbf16>
    %cst = arith.constant dense<0.000000e+00> : vector<64x512xf32>
    %3 = tpu.matmul %1, %2, %cst {dimension_numbers = #tpu.dot_dimension_numbers<[1], [0], [0], [1], [0, 0, 1, 1], [], []>} : vector<64x128xbf16>, vector<128x512xbf16>, vector<64x512xf32> -> vector<64x512xf32>
    %c0_3 = arith.constant 0 : index
    %c0_4 = arith.constant 0 : index
    %4 = vector.load %arg2[%c0_3, %c0_4] : memref<1x512xf32, #tpu.memory_space<vmem>>, vector<1x512xf32>
    %5 = vector.broadcast %4 : vector<1x512xf32> to vector<64x512xf32>
    %6 = arith.addf %3, %5 : vector<64x512xf32>
    %c0_5 = arith.constant 0 : index
    %c0_6 = arith.constant 0 : index
    %7 = vector.load %arg10[%c0_5, %c0_6] : memref<64x512xf32, #tpu.memory_space<vmem>>, vector<64x512xf32>
    tpu.vector_store %arg10[%c0_5, %c0_6], %6 {strides = array<i32>} : memref<64x512xf32, #tpu.memory_space<vmem>>, vector<64x512xf32>,
    %c0_7 = arith.constant 0 : index
    %c0_8 = arith.constant 0 : index
    %8 = vector.load %arg5[%c0_7, %c0_8] : memref<128x512xbf16, #tpu.memory_space<vmem>>, vector<128x512xbf16>
    %c0_9 = arith.constant 0 : index
    %c0_10 = arith.constant 0 : index
    %9 = vector.load %arg10[%c0_9, %c0_10] : memref<64x512xf32, #tpu.memory_space<vmem>>, vector<8x512xf32>
    %10 = vector.extract_strided_slice %9 {offsets = [0, 0], sizes = [8, 128], strides = [1, 1]} : vector<8x512xf32> to vector<8x128xf32>
    %cst_11 = arith.constant 5.000000e-01 : f32
    %11 = vector.broadcast %cst_11 : f32 to vector<8x128xf32>
    %12 = arith.mulf %11, %10 : vector<8x128xf32>
    %13 = math.tanh %12 : vector<8x128xf32>
    %cst_12 = arith.constant 5.000000e-01 : f32
    %14 = vector.broadcast %cst_12 : f32 to vector<8x128xf32>
    %15 = arith.mulf %14, %13 : vector<8x128xf32>
    %cst_13 = arith.constant 5.000000e-01 : f32
    %16 = vector.broadcast %cst_13 : f32 to vector<8x128xf32>
    %17 = arith.addf %15, %16 : vector<8x128xf32>
    %18 = vector.extract_strided_slice %9 {offsets = [0, 256], sizes = [8, 128], strides = [1, 1]} : vector<8x512xf32> to vector<8x128xf32>
    %19 = math.tanh %18 : vector<8x128xf32>
    %20 = vector.extract_strided_slice %9 {offsets = [0, 384], sizes = [8, 128], strides = [1, 1]} : vector<8x512xf32> to vector<8x128xf32>
    %cst_14 = arith.constant 5.000000e-01 : f32
    %21 = vector.broadcast %cst_14 : f32 to vector<8x128xf32>
    %22 = arith.mulf %21, %20 : vector<8x128xf32>
    %23 = math.tanh %22 : vector<8x128xf32>
    %cst_15 = arith.constant 5.000000e-01 : f32
    %24 = vector.broadcast %cst_15 : f32 to vector<8x128xf32>
    %25 = arith.mulf %24, %23 : vector<8x128xf32>
    %cst_16 = arith.constant 5.000000e-01 : f32
    %26 = vector.broadcast %cst_16 : f32 to vector<8x128xf32>
    %27 = arith.addf %25, %26 : vector<8x128xf32>
    %28 = arith.mulf %17, %19 : vector<8x128xf32>
    %29 = math.tanh %28 : vector<8x128xf32>
    %30 = arith.mulf %27, %29 : vector<8x128xf32>
    %c8 = arith.constant 8 : index
    %c0_17 = arith.constant 0 : index
    %31 = vector.load %arg10[%c8, %c0_17] : memref<64x512xf32, #tpu.memory_space<vmem>>, vector<8x512xf32>
    %32 = arith.truncf %30 : vector<8x128xf32> to vector<8x128xbf16>
    %cst_18 = arith.constant dense<0.000000e+00> : vector<8x512xf32>
    %33 = tpu.matmul %32, %8, %cst_18 {dimension_numbers = #tpu.dot_dimension_numbers<[1], [0], [0], [1], [0, 0, 1, 1], [], []>} : vector<8x128xbf16>, vector<128x512xbf16>, vector<8x512xf32> -> vector<8x512xf32>
    %34 = arith.addf %31, %33 : vector<8x512xf32>
    %35 = vector.extract_strided_slice %34 {offsets = [0, 0], sizes = [8, 128], strides = [1, 1]} : vector<8x512xf32> to vector<8x128xf32>
    %cst_19 = arith.constant 5.000000e-01 : f32
    %36 = vector.broadcast %cst_19 : f32 to vector<8x128xf32>
    %37 = arith.mulf %36, %35 : vector<8x128xf32>
    %38 = math.tanh %37 : vector<8x128xf32>
    %cst_20 = arith.constant 5.000000e-01 : f32
    %39 = vector.broadcast %cst_20 : f32 to vector<8x128xf32>
    %40 = arith.mulf %39, %38 : vector<8x128xf32>
    %cst_21 = arith.constant 5.000000e-01 : f32
    %41 = vector.broadcast %cst_21 : f32 to vector<8x128xf32>
    %42 = arith.addf %40, %41 : vector<8x128xf32>
    %43 = vector.extract_strided_slice %34 {offsets = [0, 128], sizes = [8, 128], strides = [1, 1]} : vector<8x512xf32> to vector<8x128xf32>
    %cst_22 = arith.constant 5.000000e-01 : f32
    %44 = vector.broadcast %cst_22 : f32 to vector<8x128xf32>
    %45 = arith.mulf %44, %43 : vector<8x128xf32>
    %46 = math.tanh %45 : vector<8x128xf32>
    %cst_23 = arith.constant 5.000000e-01 : f32
    %47 = vector.broadcast %cst_23 : f32 to vector<8x128xf32>
    %48 = arith.mulf %47, %46 : vector<8x128xf32>
    %cst_24 = arith.constant 5.000000e-01 : f32
    %49 = vector.broadcast %cst_24 : f32 to vector<8x128xf32>
    %50 = arith.addf %48, %49 : vector<8x128xf32>
    %51 = vector.extract_strided_slice %34 {offsets = [0, 256], sizes = [8, 128], strides = [1, 1]} : vector<8x512xf32> to vector<8x128xf32>
    %52 = math.tanh %51 : vector<8x128xf32>
    %53 = vector.extract_strided_slice %34 {offsets = [0, 384], sizes = [8, 128], strides = [1, 1]} : vector<8x512xf32> to vector<8x128xf32>
    %cst_25 = arith.constant 5.000000e-01 : f32
    %54 = vector.broadcast %cst_25 : f32 to vector<8x128xf32>
    %55 = arith.mulf %54, %53 : vector<8x128xf32>
    %56 = math.tanh %55 : vector<8x128xf32>
    %cst_26 = arith.constant 5.000000e-01 : f32
    %57 = vector.broadcast %cst_26 : f32 to vector<8x128xf32>
    %58 = arith.mulf %57, %56 : vector<8x128xf32>
    %cst_27 = arith.constant 5.000000e-01 : f32
    %59 = vector.broadcast %cst_27 : f32 to vector<8x128xf32>
    %60 = arith.addf %58, %59 : vector<8x128xf32>
    %61 = arith.mulf %50, %28 : vector<8x128xf32>
    %62 = arith.mulf %42, %52 : vector<8x128xf32>
    %63 = arith.addf %61, %62 : vector<8x128xf32>
    %64 = math.tanh %63 : vector<8x128xf32>
    %65 = arith.mulf %60, %64 : vector<8x128xf32>
    %c16 = arith.constant 16 : index
    %c0_28 = arith.constant 0 : index
    %66 = vector.load %arg10[%c16, %c0_28] : memref<64x512xf32, #tpu.memory_space<vmem>>, vector<8x512xf32>
    %67 = arith.truncf %65 : vector<8x128xf32> to vector<8x128xbf16>
    %cst_29 = arith.constant dense<0.000000e+00> : vector<8x512xf32>
    %68 = tpu.matmul %67, %8, %cst_29 {dimension_numbers = #tpu.dot_dimension_numbers<[1], [0], [0], [1], [0, 0, 1, 1], [], []>} : vector<8x128xbf16>, vector<128x512xbf16>, vector<8x512xf32> -> vector<8x512xf32>
    %69 = arith.addf %66, %68 : vector<8x512xf32>
    %70 = vector.extract_strided_slice %69 {offsets = [0, 0], sizes = [8, 128], strides = [1, 1]} : vector<8x512xf32> to vector<8x128xf32>
    %cst_30 = arith.constant 5.000000e-01 : f32
    %71 = vector.broadcast %cst_30 : f32 to vector<8x128xf32>
    %72 = arith.mulf %71, %70 : vector<8x128xf32>
    %73 = math.tanh %72 : vector<8x128xf32>
    %cst_31 = arith.constant 5.000000e-01 : f32
    %74 = vector.broadcast %cst_31 : f32 to vector<8x128xf32>
    %75 = arith.mulf %74, %73 : vector<8x128xf32>
    %cst_32 = arith.constant 5.000000e-01 : f32
    %76 = vector.broadcast %cst_32 : f32 to vector<8x128xf32>
    %77 = arith.addf %75, %76 : vector<8x128xf32>
    %78 = vector.extract_strided_slice %69 {offsets = [0, 128], sizes = [8, 128], strides = [1, 1]} : vector<8x512xf32> to vector<8x128xf32>
    %cst_33 = arith.constant 5.000000e-01 : f32
    %79 = vector.broadcast %cst_33 : f32 to vector<8x128xf32>
    %80 = arith.mulf %79, %78 : vector<8x128xf32>
    %81 = math.tanh %80 : vector<8x128xf32>
    %cst_34 = arith.constant 5.000000e-01 : f32
    %82 = vector.broadcast %cst_34 : f32 to vector<8x128xf32>
    %83 = arith.mulf %82, %81 : vector<8x128xf32>
    %cst_35 = arith.constant 5.000000e-01 : f32
    %84 = vector.broadcast %cst_35 : f32 to vector<8x128xf32>
    %85 = arith.addf %83, %84 : vector<8x128xf32>
    %86 = vector.extract_strided_slice %69 {offsets = [0, 256], sizes = [8, 128], strides = [1, 1]} : vector<8x512xf32> to vector<8x128xf32>
    %87 = math.tanh %86 : vector<8x128xf32>
    %88 = vector.extract_strided_slice %69 {offsets = [0, 384], sizes = [8, 128], strides = [1, 1]} : vector<8x512xf32> to vector<8x128xf32>
    %cst_36 = arith.constant 5.000000e-01 : f32
    %89 = vector.broadcast %cst_36 : f32 to vector<8x128xf32>
    %90 = arith.mulf %89, %88 : vector<8x128xf32>
    %91 = math.tanh %90 : vector<8x128xf32>
    %cst_37 = arith.constant 5.000000e-01 : f32
    %92 = vector.broadcast %cst_37 : f32 to vector<8x128xf32>
    %93 = arith.mulf %92, %91 : vector<8x128xf32>
    %cst_38 = arith.constant 5.000000e-01 : f32
    %94 = vector.broadcast %cst_38 : f32 to vector<8x128xf32>
    %95 = arith.addf %93, %94 : vector<8x128xf32>
    %96 = arith.mulf %85, %63 : vector<8x128xf32>
    %97 = arith.mulf %77, %87 : vector<8x128xf32>
    %98 = arith.addf %96, %97 : vector<8x128xf32>
    %99 = math.tanh %98 : vector<8x128xf32>
    %100 = arith.mulf %95, %99 : vector<8x128xf32>
    %c24 = arith.constant 24 : index
    %c0_39 = arith.constant 0 : index
    %101 = vector.load %arg10[%c24, %c0_39] : memref<64x512xf32, #tpu.memory_space<vmem>>, vector<8x512xf32>
    %102 = arith.truncf %100 : vector<8x128xf32> to vector<8x128xbf16>
    %cst_40 = arith.constant dense<0.000000e+00> : vector<8x512xf32>
    %103 = tpu.matmul %102, %8, %cst_40 {dimension_numbers = #tpu.dot_dimension_numbers<[1], [0], [0], [1], [0, 0, 1, 1], [], []>} : vector<8x128xbf16>, vector<128x512xbf16>, vector<8x512xf32> -> vector<8x512xf32>
    %104 = arith.addf %101, %103 : vector<8x512xf32>
    %105 = vector.extract_strided_slice %104 {offsets = [0, 0], sizes = [8, 128], strides = [1, 1]} : vector<8x512xf32> to vector<8x128xf32>
    %cst_41 = arith.constant 5.000000e-01 : f32
    %106 = vector.broadcast %cst_41 : f32 to vector<8x128xf32>
    %107 = arith.mulf %106, %105 : vector<8x128xf32>
    %108 = math.tanh %107 : vector<8x128xf32>
    %cst_42 = arith.constant 5.000000e-01 : f32
    %109 = vector.broadcast %cst_42 : f32 to vector<8x128xf32>
    %110 = arith.mulf %109, %108 : vector<8x128xf32>
    %cst_43 = arith.constant 5.000000e-01 : f32
    %111 = vector.broadcast %cst_43 : f32 to vector<8x128xf32>
    %112 = arith.addf %110, %111 : vector<8x128xf32>
    %113 = vector.extract_strided_slice %104 {offsets = [0, 128], sizes = [8, 128], strides = [1, 1]} : vector<8x512xf32> to vector<8x128xf32>
    %cst_44 = arith.constant 5.000000e-01 : f32
    %114 = vector.broadcast %cst_44 : f32 to vector<8x128xf32>
    %115 = arith.mulf %114, %113 : vector<8x128xf32>
    %116 = math.tanh %115 : vector<8x128xf32>
    %cst_45 = arith.constant 5.000000e-01 : f32
    %117 = vector.broadcast %cst_45 : f32 to vector<8x128xf32>
    %118 = arith.mulf %117, %116 : vector<8x128xf32>
    %cst_46 = arith.constant 5.000000e-01 : f32
    %119 = vector.broadcast %cst_46 : f32 to vector<8x128xf32>
    %120 = arith.addf %118, %119 : vector<8x128xf32>
    %121 = vector.extract_strided_slice %104 {offsets = [0, 256], sizes = [8, 128], strides = [1, 1]} : vector<8x512xf32> to vector<8x128xf32>
    %122 = math.tanh %121 : vector<8x128xf32>
    %123 = vector.extract_strided_slice %104 {offsets = [0, 384], sizes = [8, 128], strides = [1, 1]} : vector<8x512xf32> to vector<8x128xf32>
    %cst_47 = arith.constant 5.000000e-01 : f32
    %124 = vector.broadcast %cst_47 : f32 to vector<8x128xf32>
    %125 = arith.mulf %124, %123 : vector<8x128xf32>
    %126 = math.tanh %125 : vector<8x128xf32>
    %cst_48 = arith.constant 5.000000e-01 : f32
    %127 = vector.broadcast %cst_48 : f32 to vector<8x128xf32>
    %128 = arith.mulf %127, %126 : vector<8x128xf32>
    %cst_49 = arith.constant 5.000000e-01 : f32
    %129 = vector.broadcast %cst_49 : f32 to vector<8x128xf32>
    %130 = arith.addf %128, %129 : vector<8x128xf32>
    %131 = arith.mulf %120, %98 : vector<8x128xf32>
    %132 = arith.mulf %112, %122 : vector<8x128xf32>
    %133 = arith.addf %131, %132 : vector<8x128xf32>
    %134 = math.tanh %133 : vector<8x128xf32>
    %135 = arith.mulf %130, %134 : vector<8x128xf32>
    %c32 = arith.constant 32 : index
    %c0_50 = arith.constant 0 : index
    %136 = vector.load %arg10[%c32, %c0_50] : memref<64x512xf32, #tpu.memory_space<vmem>>, vector<8x512xf32>
    %137 = arith.truncf %135 : vector<8x128xf32> to vector<8x128xbf16>
    %cst_51 = arith.constant dense<0.000000e+00> : vector<8x512xf32>
    %138 = tpu.matmul %137, %8, %cst_51 {dimension_numbers = #tpu.dot_dimension_numbers<[1], [0], [0], [1], [0, 0, 1, 1], [], []>} : vector<8x128xbf16>, vector<128x512xbf16>, vector<8x512xf32> -> vector<8x512xf32>
    %139 = arith.addf %136, %138 : vector<8x512xf32>
    %140 = vector.extract_strided_slice %139 {offsets = [0, 0], sizes = [8, 128], strides = [1, 1]} : vector<8x512xf32> to vector<8x128xf32>
    %cst_52 = arith.constant 5.000000e-01 : f32
    %141 = vector.broadcast %cst_52 : f32 to vector<8x128xf32>
    %142 = arith.mulf %141, %140 : vector<8x128xf32>
    %143 = math.tanh %142 : vector<8x128xf32>
    %cst_53 = arith.constant 5.000000e-01 : f32
    %144 = vector.broadcast %cst_53 : f32 to vector<8x128xf32>
    %145 = arith.mulf %144, %143 : vector<8x128xf32>
    %cst_54 = arith.constant 5.000000e-01 : f32
    %146 = vector.broadcast %cst_54 : f32 to vector<8x128xf32>
    %147 = arith.addf %145, %146 : vector<8x128xf32>
    %148 = vector.extract_strided_slice %139 {offsets = [0, 128], sizes = [8, 128], strides = [1, 1]} : vector<8x512xf32> to vector<8x128xf32>
    %cst_55 = arith.constant 5.000000e-01 : f32
    %149 = vector.broadcast %cst_55 : f32 to vector<8x128xf32>
    %150 = arith.mulf %149, %148 : vector<8x128xf32>
    %151 = math.tanh %150 : vector<8x128xf32>
    %cst_56 = arith.constant 5.000000e-01 : f32
    %152 = vector.broadcast %cst_56 : f32 to vector<8x128xf32>
    %153 = arith.mulf %152, %151 : vector<8x128xf32>
    %cst_57 = arith.constant 5.000000e-01 : f32
    %154 = vector.broadcast %cst_57 : f32 to vector<8x128xf32>
    %155 = arith.addf %153, %154 : vector<8x128xf32>
    %156 = vector.extract_strided_slice %139 {offsets = [0, 256], sizes = [8, 128], strides = [1, 1]} : vector<8x512xf32> to vector<8x128xf32>
    %157 = math.tanh %156 : vector<8x128xf32>
    %158 = vector.extract_strided_slice %139 {offsets = [0, 384], sizes = [8, 128], strides = [1, 1]} : vector<8x512xf32> to vector<8x128xf32>
    %cst_58 = arith.constant 5.000000e-01 : f32
    %159 = vector.broadcast %cst_58 : f32 to vector<8x128xf32>
    %160 = arith.mulf %159, %158 : vector<8x128xf32>
    %161 = math.tanh %160 : vector<8x128xf32>
    %cst_59 = arith.constant 5.000000e-01 : f32
    %162 = vector.broadcast %cst_59 : f32 to vector<8x128xf32>
    %163 = arith.mulf %162, %161 : vector<8x128xf32>
    %cst_60 = arith.constant 5.000000e-01 : f32
    %164 = vector.broadcast %cst_60 : f32 to vector<8x128xf32>
    %165 = arith.addf %163, %164 : vector<8x128xf32>
    %166 = arith.mulf %155, %133 : vector<8x128xf32>
    %167 = arith.mulf %147, %157 : vector<8x128xf32>
    %168 = arith.addf %166, %167 : vector<8x128xf32>
    %169 = math.tanh %168 : vector<8x128xf32>
    %170 = arith.mulf %165, %169 : vector<8x128xf32>
    %c40 = arith.constant 40 : index
    %c0_61 = arith.constant 0 : index
    %171 = vector.load %arg10[%c40, %c0_61] : memref<64x512xf32, #tpu.memory_space<vmem>>, vector<8x512xf32>
    %172 = arith.truncf %170 : vector<8x128xf32> to vector<8x128xbf16>
    %cst_62 = arith.constant dense<0.000000e+00> : vector<8x512xf32>
    %173 = tpu.matmul %172, %8, %cst_62 {dimension_numbers = #tpu.dot_dimension_numbers<[1], [0], [0], [1], [0, 0, 1, 1], [], []>} : vector<8x128xbf16>, vector<128x512xbf16>, vector<8x512xf32> -> vector<8x512xf32>
    %174 = arith.addf %171, %173 : vector<8x512xf32>
    %175 = vector.extract_strided_slice %174 {offsets = [0, 0], sizes = [8, 128], strides = [1, 1]} : vector<8x512xf32> to vector<8x128xf32>
    %cst_63 = arith.constant 5.000000e-01 : f32
    %176 = vector.broadcast %cst_63 : f32 to vector<8x128xf32>
    %177 = arith.mulf %176, %175 : vector<8x128xf32>
    %178 = math.tanh %177 : vector<8x128xf32>
    %cst_64 = arith.constant 5.000000e-01 : f32
    %179 = vector.broadcast %cst_64 : f32 to vector<8x128xf32>
    %180 = arith.mulf %179, %178 : vector<8x128xf32>
    %cst_65 = arith.constant 5.000000e-01 : f32
    %181 = vector.broadcast %cst_65 : f32 to vector<8x128xf32>
    %182 = arith.addf %180, %181 : vector<8x128xf32>
    %183 = vector.extract_strided_slice %174 {offsets = [0, 128], sizes = [8, 128], strides = [1, 1]} : vector<8x512xf32> to vector<8x128xf32>
    %cst_66 = arith.constant 5.000000e-01 : f32
    %184 = vector.broadcast %cst_66 : f32 to vector<8x128xf32>
    %185 = arith.mulf %184, %183 : vector<8x128xf32>
    %186 = math.tanh %185 : vector<8x128xf32>
    %cst_67 = arith.constant 5.000000e-01 : f32
    %187 = vector.broadcast %cst_67 : f32 to vector<8x128xf32>
    %188 = arith.mulf %187, %186 : vector<8x128xf32>
    %cst_68 = arith.constant 5.000000e-01 : f32
    %189 = vector.broadcast %cst_68 : f32 to vector<8x128xf32>
    %190 = arith.addf %188, %189 : vector<8x128xf32>
    %191 = vector.extract_strided_slice %174 {offsets = [0, 256], sizes = [8, 128], strides = [1, 1]} : vector<8x512xf32> to vector<8x128xf32>
    %192 = math.tanh %191 : vector<8x128xf32>
    %193 = vector.extract_strided_slice %174 {offsets = [0, 384], sizes = [8, 128], strides = [1, 1]} : vector<8x512xf32> to vector<8x128xf32>
    %cst_69 = arith.constant 5.000000e-01 : f32
    %194 = vector.broadcast %cst_69 : f32 to vector<8x128xf32>
    %195 = arith.mulf %194, %193 : vector<8x128xf32>
    %196 = math.tanh %195 : vector<8x128xf32>
    %cst_70 = arith.constant 5.000000e-01 : f32
    %197 = vector.broadcast %cst_70 : f32 to vector<8x128xf32>
    %198 = arith.mulf %197, %196 : vector<8x128xf32>
    %cst_71 = arith.constant 5.000000e-01 : f32
    %199 = vector.broadcast %cst_71 : f32 to vector<8x128xf32>
    %200 = arith.addf %198, %199 : vector<8x128xf32>
    %201 = arith.mulf %190, %168 : vector<8x128xf32>
    %202 = arith.mulf %182, %192 : vector<8x128xf32>
    %203 = arith.addf %201, %202 : vector<8x128xf32>
    %204 = math.tanh %203 : vector<8x128xf32>
    %205 = arith.mulf %200, %204 : vector<8x128xf32>
    %c48 = arith.constant 48 : index
    %c0_72 = arith.constant 0 : index
    %206 = vector.load %arg10[%c48, %c0_72] : memref<64x512xf32, #tpu.memory_space<vmem>>, vector<8x512xf32>
    %207 = arith.truncf %205 : vector<8x128xf32> to vector<8x128xbf16>
    %cst_73 = arith.constant dense<0.000000e+00> : vector<8x512xf32>
    %208 = tpu.matmul %207, %8, %cst_73 {dimension_numbers = #tpu.dot_dimension_numbers<[1], [0], [0], [1], [0, 0, 1, 1], [], []>} : vector<8x128xbf16>, vector<128x512xbf16>, vector<8x512xf32> -> vector<8x512xf32>
    %209 = arith.addf %206, %208 : vector<8x512xf32>
    %210 = vector.extract_strided_slice %209 {offsets = [0, 0], sizes = [8, 128], strides = [1, 1]} : vector<8x512xf32> to vector<8x128xf32>
    %cst_74 = arith.constant 5.000000e-01 : f32
    %211 = vector.broadcast %cst_74 : f32 to vector<8x128xf32>
    %212 = arith.mulf %211, %210 : vector<8x128xf32>
    %213 = math.tanh %212 : vector<8x128xf32>
    %cst_75 = arith.constant 5.000000e-01 : f32
    %214 = vector.broadcast %cst_75 : f32 to vector<8x128xf32>
    %215 = arith.mulf %214, %213 : vector<8x128xf32>
    %cst_76 = arith.constant 5.000000e-01 : f32
    %216 = vector.broadcast %cst_76 : f32 to vector<8x128xf32>
    %217 = arith.addf %215, %216 : vector<8x128xf32>
    %218 = vector.extract_strided_slice %209 {offsets = [0, 128], sizes = [8, 128], strides = [1, 1]} : vector<8x512xf32> to vector<8x128xf32>
    %cst_77 = arith.constant 5.000000e-01 : f32
    %219 = vector.broadcast %cst_77 : f32 to vector<8x128xf32>
    %220 = arith.mulf %219, %218 : vector<8x128xf32>
    %221 = math.tanh %220 : vector<8x128xf32>
    %cst_78 = arith.constant 5.000000e-01 : f32
    %222 = vector.broadcast %cst_78 : f32 to vector<8x128xf32>
    %223 = arith.mulf %222, %221 : vector<8x128xf32>
    %cst_79 = arith.constant 5.000000e-01 : f32
    %224 = vector.broadcast %cst_79 : f32 to vector<8x128xf32>
    %225 = arith.addf %223, %224 : vector<8x128xf32>
    %226 = vector.extract_strided_slice %209 {offsets = [0, 256], sizes = [8, 128], strides = [1, 1]} : vector<8x512xf32> to vector<8x128xf32>
    %227 = math.tanh %226 : vector<8x128xf32>
    %228 = vector.extract_strided_slice %209 {offsets = [0, 384], sizes = [8, 128], strides = [1, 1]} : vector<8x512xf32> to vector<8x128xf32>
    %cst_80 = arith.constant 5.000000e-01 : f32
    %229 = vector.broadcast %cst_80 : f32 to vector<8x128xf32>
    %230 = arith.mulf %229, %228 : vector<8x128xf32>
    %231 = math.tanh %230 : vector<8x128xf32>
    %cst_81 = arith.constant 5.000000e-01 : f32
    %232 = vector.broadcast %cst_81 : f32 to vector<8x128xf32>
    %233 = arith.mulf %232, %231 : vector<8x128xf32>
    %cst_82 = arith.constant 5.000000e-01 : f32
    %234 = vector.broadcast %cst_82 : f32 to vector<8x128xf32>
    %235 = arith.addf %233, %234 : vector<8x128xf32>
    %236 = arith.mulf %225, %203 : vector<8x128xf32>
    %237 = arith.mulf %217, %227 : vector<8x128xf32>
    %238 = arith.addf %236, %237 : vector<8x128xf32>
    %239 = math.tanh %238 : vector<8x128xf32>
    %240 = arith.mulf %235, %239 : vector<8x128xf32>
    %c56 = arith.constant 56 : index
    %c0_83 = arith.constant 0 : index
    %241 = vector.load %arg10[%c56, %c0_83] : memref<64x512xf32, #tpu.memory_space<vmem>>, vector<8x512xf32>
    %242 = arith.truncf %240 : vector<8x128xf32> to vector<8x128xbf16>
    %cst_84 = arith.constant dense<0.000000e+00> : vector<8x512xf32>
    %243 = tpu.matmul %242, %8, %cst_84 {dimension_numbers = #tpu.dot_dimension_numbers<[1], [0], [0], [1], [0, 0, 1, 1], [], []>} : vector<8x128xbf16>, vector<128x512xbf16>, vector<8x512xf32> -> vector<8x512xf32>
    %244 = arith.addf %241, %243 : vector<8x512xf32>
    %245 = vector.extract_strided_slice %244 {offsets = [0, 0], sizes = [8, 128], strides = [1, 1]} : vector<8x512xf32> to vector<8x128xf32>
    %cst_85 = arith.constant 5.000000e-01 : f32
    %246 = vector.broadcast %cst_85 : f32 to vector<8x128xf32>
    %247 = arith.mulf %246, %245 : vector<8x128xf32>
    %248 = math.tanh %247 : vector<8x128xf32>
    %cst_86 = arith.constant 5.000000e-01 : f32
    %249 = vector.broadcast %cst_86 : f32 to vector<8x128xf32>
    %250 = arith.mulf %249, %248 : vector<8x128xf32>
    %cst_87 = arith.constant 5.000000e-01 : f32
    %251 = vector.broadcast %cst_87 : f32 to vector<8x128xf32>
    %252 = arith.addf %250, %251 : vector<8x128xf32>
    %253 = vector.extract_strided_slice %244 {offsets = [0, 128], sizes = [8, 128], strides = [1, 1]} : vector<8x512xf32> to vector<8x128xf32>
    %cst_88 = arith.constant 5.000000e-01 : f32
    %254 = vector.broadcast %cst_88 : f32 to vector<8x128xf32>
    %255 = arith.mulf %254, %253 : vector<8x128xf32>
    %256 = math.tanh %255 : vector<8x128xf32>
    %cst_89 = arith.constant 5.000000e-01 : f32
    %257 = vector.broadcast %cst_89 : f32 to vector<8x128xf32>
    %258 = arith.mulf %257, %256 : vector<8x128xf32>
    %cst_90 = arith.constant 5.000000e-01 : f32
    %259 = vector.broadcast %cst_90 : f32 to vector<8x128xf32>
    %260 = arith.addf %258, %259 : vector<8x128xf32>
    %261 = vector.extract_strided_slice %244 {offsets = [0, 256], sizes = [8, 128], strides = [1, 1]} : vector<8x512xf32> to vector<8x128xf32>
    %262 = math.tanh %261 : vector<8x128xf32>
    %263 = vector.extract_strided_slice %244 {offsets = [0, 384], sizes = [8, 128], strides = [1, 1]} : vector<8x512xf32> to vector<8x128xf32>
    %cst_91 = arith.constant 5.000000e-01 : f32
    %264 = vector.broadcast %cst_91 : f32 to vector<8x128xf32>
    %265 = arith.mulf %264, %263 : vector<8x128xf32>
    %266 = math.tanh %265 : vector<8x128xf32>
    %cst_92 = arith.constant 5.000000e-01 : f32
    %267 = vector.broadcast %cst_92 : f32 to vector<8x128xf32>
    %268 = arith.mulf %267, %266 : vector<8x128xf32>
    %cst_93 = arith.constant 5.000000e-01 : f32
    %269 = vector.broadcast %cst_93 : f32 to vector<8x128xf32>
    %270 = arith.addf %268, %269 : vector<8x128xf32>
    %271 = arith.mulf %260, %238 : vector<8x128xf32>
    %272 = arith.mulf %252, %262 : vector<8x128xf32>
    %273 = arith.addf %271, %272 : vector<8x128xf32>
    %274 = math.tanh %273 : vector<8x128xf32>
    %275 = arith.mulf %270, %274 : vector<8x128xf32>
    %276 = vector.extract_strided_slice %1 {offsets = [56, 0], sizes = [8, 128], strides = [1, 1]} : vector<64x128xbf16> to vector<8x128xbf16>
    %c0_94 = arith.constant 0 : index
    %c0_95 = arith.constant 0 : index
    %277 = vector.load %arg3[%c0_94, %c0_95] : memref<128x512xbf16, #tpu.memory_space<vmem>>, vector<128x512xbf16>
    %cst_96 = arith.constant dense<0.000000e+00> : vector<8x512xf32>
    %278 = tpu.matmul %276, %277, %cst_96 {dimension_numbers = #tpu.dot_dimension_numbers<[1], [0], [0], [1], [0, 0, 1, 1], [], []>} : vector<8x128xbf16>, vector<128x512xbf16>, vector<8x512xf32> -> vector<8x512xf32>
    %c0_97 = arith.constant 0 : index
    %c0_98 = arith.constant 0 : index
    %279 = vector.load %arg4[%c0_97, %c0_98] : memref<1x512xf32, #tpu.memory_space<vmem>>, vector<1x512xf32>
    %280 = vector.broadcast %279 : vector<1x512xf32> to vector<8x512xf32>
    %281 = arith.addf %278, %280 : vector<8x512xf32>
    %282 = vector.extract_strided_slice %281 {offsets = [0, 0], sizes = [8, 128], strides = [1, 1]} : vector<8x512xf32> to vector<8x128xf32>
    %cst_99 = arith.constant 5.000000e-01 : f32
    %283 = vector.broadcast %cst_99 : f32 to vector<8x128xf32>
    %284 = arith.mulf %283, %282 : vector<8x128xf32>
    %285 = math.tanh %284 : vector<8x128xf32>
    %cst_100 = arith.constant 5.000000e-01 : f32
    %286 = vector.broadcast %cst_100 : f32 to vector<8x128xf32>
    %287 = arith.mulf %286, %285 : vector<8x128xf32>
    %cst_101 = arith.constant 5.000000e-01 : f32
    %288 = vector.broadcast %cst_101 : f32 to vector<8x128xf32>
    %289 = arith.addf %287, %288 : vector<8x128xf32>
    %290 = vector.extract_strided_slice %281 {offsets = [0, 256], sizes = [8, 128], strides = [1, 1]} : vector<8x512xf32> to vector<8x128xf32>
    %291 = math.tanh %290 : vector<8x128xf32>
    %292 = vector.extract_strided_slice %281 {offsets = [0, 384], sizes = [8, 128], strides = [1, 1]} : vector<8x512xf32> to vector<8x128xf32>
    %cst_102 = arith.constant 5.000000e-01 : f32
    %293 = vector.broadcast %cst_102 : f32 to vector<8x128xf32>
    %294 = arith.mulf %293, %292 : vector<8x128xf32>
    %295 = math.tanh %294 : vector<8x128xf32>
    %cst_103 = arith.constant 5.000000e-01 : f32
    %296 = vector.broadcast %cst_103 : f32 to vector<8x128xf32>
    %297 = arith.mulf %296, %295 : vector<8x128xf32>
    %cst_104 = arith.constant 5.000000e-01 : f32
    %298 = vector.broadcast %cst_104 : f32 to vector<8x128xf32>
    %299 = arith.addf %297, %298 : vector<8x128xf32>
    %300 = arith.mulf %289, %291 : vector<8x128xf32>
    %301 = math.tanh %300 : vector<8x128xf32>
    %302 = arith.mulf %299, %301 : vector<8x128xf32>
    %c0_105 = arith.constant 0 : index
    %c0_106 = arith.constant 0 : index
    %303 = vector.load %arg6[%c0_105, %c0_106] : memref<128x128xf32, #tpu.memory_space<vmem>>, vector<128x128xf32>
    %cst_107 = arith.constant dense<0.000000e+00> : vector<8x128xf32>
    %304 = tpu.matmul %275, %303, %cst_107 {dimension_numbers = #tpu.dot_dimension_numbers<[1], [0], [0], [1], [0, 0, 1, 1], [], []>} : vector<8x128xf32>, vector<128x128xf32>, vector<8x128xf32> -> vector<8x128xf32>
    %c0_108 = arith.constant 0 : index
    %c0_109 = arith.constant 0 : index
    %305 = vector.load %arg7[%c0_108, %c0_109] : memref<128x128xf32, #tpu.memory_space<vmem>>, vector<128x128xf32>
    %cst_110 = arith.constant dense<0.000000e+00> : vector<8x128xf32>
    %306 = tpu.matmul %302, %305, %cst_110 {dimension_numbers = #tpu.dot_dimension_numbers<[1], [0], [0], [1], [0, 0, 1, 1], [], []>} : vector<8x128xf32>, vector<128x128xf32>, vector<8x128xf32> -> vector<8x128xf32>
    %307 = arith.addf %304, %306 : vector<8x128xf32>
    %c0_111 = arith.constant 0 : index
    %c0_112 = arith.constant 0 : index
    %308 = vector.load %arg8[%c0_111, %c0_112] : memref<1x128xf32, #tpu.memory_space<vmem>>, vector<1x128xf32>
    %309 = vector.broadcast %308 : vector<1x128xf32> to vector<8x128xf32>
    %310 = arith.addf %307, %309 : vector<8x128xf32>
    %c0_113 = arith.constant 0 : index
    %c0_114 = arith.constant 0 : index
    %311 = vector.load %arg9[%c0_113, %c0_114] : memref<8x128xf32, #tpu.memory_space<vmem>>, vector<8x128xf32>
    tpu.vector_store %arg9[%c0_113, %c0_114], %310 {strides = array<i32>} : memref<8x128xf32, #tpu.memory_space<vmem>>, vector<8x128xf32>,
    return
  }
}

</mosaic_0001>

<llo_original>
// kernel: spelling_rnn_forward.1
$region0: #{spelling_rnn_forward.1}
  #allocation0 [shape = 'u32[]', space=smem, size = 0x4, offset = 0x4, fixed_abs, tag = 'smem constant byte address 0x4 - core index']
  #allocation1 [shape = 'u32[144,128]{1,0:T(1,128)}', space=vmem, size = 0x12000, scoped, tag = 'internal scratch']
  #allocation2 [shape = 'f32[64,512]{1,0:T(8,128)}', space=vmem, size = 0x20000, scoped, tag = 'scratch operand']
  %s0 = inlined_call_operand.vmem [shape: f32[64,128], index: 0, kind: input, shape index: {}]
  %s1 = inlined_call_operand.hbm [shape: bf16[128,512], index: 1, kind: input, shape index: {}]
  %s2 = inlined_call_operand.vmem [shape: f32[1,512], index: 2, kind: input, shape index: {}]
  %s3 = inlined_call_operand.hbm [shape: bf16[128,512], index: 3, kind: input, shape index: {}]
  %s4 = inlined_call_operand.hbm [shape: f32[1,512], index: 4, kind: input, shape index: {}]
  %s5 = inlined_call_operand.hbm [shape: bf16[128,512], index: 5, kind: input, shape index: {}]
  %s6 = inlined_call_operand.vmem [shape: f32[128,128], index: 6, kind: input, shape index: {}]
  %s7 = inlined_call_operand.hbm [shape: f32[128,128], index: 7, kind: input, shape index: {}]
  %s8 = inlined_call_operand.vmem [shape: f32[1,128], index: 8, kind: input, shape index: {}]
  %s9 = inlined_call_operand.vmem [shape: f32[8,128], index: 9, kind: output, shape index: {}]
  %s10 = sld [smem:[#allocation0]]
  $region66: #{spelling_rnn_forward.1} parent=0
    _
  %s12 = ssub.s32 1, %s10
  %s13 = scalar_select 0, %s12, %s10
  $region1: #{spelling_rnn_forward.1} parent=0
    #allocation3 [shape = 'u8[131072]{0}', space=vmem, size = 0x20000, scoped, tag = 'input window, operand 1, single buffered']
    #allocation4 [shape = 's32[1]{0}', space=sflag, size = 0x4, scoped, tag = 'scoped memory for spelling_rnn_forward.1']
    #allocation5 [shape = 'u8[131072]{0}', space=vmem, size = 0x20000, scoped, tag = 'input window, operand 3, single buffered']
    #allocation6 [shape = 's32[1]{0}', space=sflag, size = 0x4, scoped, tag = 'scoped memory for spelling_rnn_forward.1']
    #allocation7 [shape = 'u8[2048]{0}', space=vmem, size = 0x800, scoped, tag = 'input window, operand 4, single buffered']
    #allocation8 [shape = 'u8[131072]{0}', space=vmem, size = 0x20000, scoped, tag = 'input window, operand 5, single buffered']
    #allocation9 [shape = 's32[1]{0}', space=sflag, size = 0x4, scoped, tag = 'scoped memory for spelling_rnn_forward.1']
    #allocation10 [shape = 'u8[65536]{0}', space=vmem, size = 0x10000, scoped, tag = 'input window, operand 7, single buffered']
    %14 = vsyncpa [#allocation4], 0
    %15 = vsyncpa [#allocation6], 0
    %16 = vsyncpa [#allocation9], 0
    // Predicated region
    $region2: #{spelling_rnn_forward.1} parent=1 // pred_check
      _
    $region3: #{spelling_rnn_forward.1} parent=1 // pred_check_branch
      %18 = sbr.rel (0) target = $region5
    $region4: #{spelling_rnn_forward.1} parent=1 // pred_region
      _
    $region5: #{spelling_rnn_forward.1} parent=1 // pred_fallthru
      _
    // Predicated region
    $region6: #{spelling_rnn_forward.1} parent=1 // pred_check
      _
    $region7: #{spelling_rnn_forward.1} parent=1 // pred_check_branch
      %20 = sbr.rel (0) target = $region9
    $region8: #{spelling_rnn_forward.1} parent=1 // pred_region
      %s22 = ssub.s32 4096, 4096
      %23 = vsyncadd [#allocation4], %s22
      %s24 = sshll.u32 [#allocation3], 4
      %s25 = int_to_ptr.vmem [resolvable:$true] %s24
      %30 = dma.hbm_to_vmem [thread:$0]  %s1, 4096, %s25, [#allocation4], 256, 256, 16
    $region9: #{spelling_rnn_forward.1} parent=1 // pred_fallthru
      _
    // Predicated region
    $region10: #{spelling_rnn_forward.1} parent=1 // pred_check
      _
    $region11: #{spelling_rnn_forward.1} parent=1 // pred_check_branch
      %32 = sbr.rel (0) target = $region13
    $region12: #{spelling_rnn_forward.1} parent=1 // pred_region
      _
    $region13: #{spelling_rnn_forward.1} parent=1 // pred_fallthru
      _
    // Predicated region
    $region14: #{spelling_rnn_forward.1} parent=1 // pred_check
      _
    $region15: #{spelling_rnn_forward.1} parent=1 // pred_check_branch
      %34 = sbr.rel (0) target = $region17
    $region16: #{spelling_rnn_forward.1} parent=1 // pred_region
      %s36 = ssub.s32 4096, 4096
      %37 = vsyncadd [#allocation6], %s36
      %s38 = sshll.u32 [#allocation5], 4
      %s39 = int_to_ptr.vmem [resolvable:$true] %s38
      %44 = dma.hbm_to_vmem [thread:$0]  %s3, 4096, %s39, [#allocation6], 256, 256, 16
    $region17: #{spelling_rnn_forward.1} parent=1 // pred_fallthru
      _
    // Predicated region
    $region18: #{spelling_rnn_forward.1} parent=1 // pred_check
      _
    $region19: #{spelling_rnn_forward.1} parent=1 // pred_check_branch
      %46 = sbr.rel (0) target = $region21
    $region20: #{spelling_rnn_forward.1} parent=1 // pred_region
      %s48 = ssub.s32 64, 64
      %49 = vsyncadd [#allocation6], %s48
      %s51 = sshll.u32 [#allocation7], 4
      %s52 = int_to_ptr.vmem [resolvable:$true] %s51
      %54 = dma.hbm_to_vmem [thread:$0]  %s4, 64, %s52, [#allocation6]
    $region21: #{spelling_rnn_forward.1} parent=1 // pred_fallthru
      _
    // Predicated region
    $region22: #{spelling_rnn_forward.1} parent=1 // pred_check
      _
    $region23: #{spelling_rnn_forward.1} parent=1 // pred_check_branch
      %56 = sbr.rel (0) target = $region25
    $region24: #{spelling_rnn_forward.1} parent=1 // pred_region
      %s58 = ssub.s32 4096, 4096
      %59 = vsyncadd [#allocation9], %s58
      %s60 = sshll.u32 [#allocation8], 4
      %s61 = int_to_ptr.vmem [resolvable:$true] %s60
      %66 = dma.hbm_to_vmem [thread:$0]  %s5, 4096, %s61, [#allocation9], 256, 256, 16
    $region25: #{spelling_rnn_forward.1} parent=1 // pred_fallthru
      _
    // Predicated region
    $region26: #{spelling_rnn_forward.1} parent=1 // pred_check
      _
    $region27: #{spelling_rnn_forward.1} parent=1 // pred_check_branch
      %68 = sbr.rel (0) target = $region29
    $region28: #{spelling_rnn_forward.1} parent=1 // pred_region
      _
    $region29: #{spelling_rnn_forward.1} parent=1 // pred_fallthru
      _
    // Predicated region
    $region30: #{spelling_rnn_forward.1} parent=1 // pred_check
      _
    $region31: #{spelling_rnn_forward.1} parent=1 // pred_check_branch
      %70 = sbr.rel (0) target = $region33
    $region32: #{spelling_rnn_forward.1} parent=1 // pred_region
      %s72 = ssub.s32 2048, 2048
      %73 = vsyncadd [#allocation9], %s72
      %s74 = sshll.u32 [#allocation10], 4
      %s75 = int_to_ptr.vmem [resolvable:$true] %s74
      %80 = dma.hbm_to_vmem [thread:$0]  %s7, 2048, %s75, [#allocation9], 128, 128, 8
    $region33: #{spelling_rnn_forward.1} parent=1 // pred_fallthru
      _
    // Predicated region
    $region34: #{spelling_rnn_forward.1} parent=1 // pred_check
      _
    $region35: #{spelling_rnn_forward.1} parent=1 // pred_check_branch
      %82 = sbr.rel (0) target = $region37
    $region36: #{spelling_rnn_forward.1} parent=1 // pred_region
      _
    $region37: #{spelling_rnn_forward.1} parent=1 // pred_fallthru
      _
    // Predicated region
    $region38: #{spelling_rnn_forward.1} parent=1 // pred_check
      _
    $region39: #{spelling_rnn_forward.1} parent=1 // pred_check_branch
      %84 = sbr.rel (0) target = $region41
    $region40: #{spelling_rnn_forward.1} parent=1 // pred_region
      %85 = dma.done [#allocation4], 4096
    $region41: #{spelling_rnn_forward.1} parent=1 // pred_fallthru
      _
    // Predicated region
    $region42: #{spelling_rnn_forward.1} parent=1 // pred_check
      _
    $region43: #{spelling_rnn_forward.1} parent=1 // pred_check_branch
      %87 = sbr.rel (0) target = $region45
    $region44: #{spelling_rnn_forward.1} parent=1 // pred_region
      %88 = dma.done [#allocation6], 4096
    $region45: #{spelling_rnn_forward.1} parent=1 // pred_fallthru
      _
    // Predicated region
    $region46: #{spelling_rnn_forward.1} parent=1 // pred_check
      _
    $region47: #{spelling_rnn_forward.1} parent=1 // pred_check_branch
      %90 = sbr.rel (0) target = $region49
    $region48: #{spelling_rnn_forward.1} parent=1 // pred_region
      %91 = dma.done [#allocation6], 64
    $region49: #{spelling_rnn_forward.1} parent=1 // pred_fallthru
      _
    // Predicated region
    $region50: #{spelling_rnn_forward.1} parent=1 // pred_check
      _
    $region51: #{spelling_rnn_forward.1} parent=1 // pred_check_branch
      %93 = sbr.rel (0) target = $region53
    $region52: #{spelling_rnn_forward.1} parent=1 // pred_region
      %94 = dma.done [#allocation9], 4096
    $region53: #{spelling_rnn_forward.1} parent=1 // pred_fallthru
      _
    // Predicated region
    $region54: #{spelling_rnn_forward.1} parent=1 // pred_check
      _
    $region55: #{spelling_rnn_forward.1} parent=1 // pred_check_branch
      %96 = sbr.rel (0) target = $region57
    $region56: #{spelling_rnn_forward.1} parent=1 // pred_region
      %97 = dma.done [#allocation9], 2048
    $region57: #{spelling_rnn_forward.1} parent=1 // pred_fallthru
      _
    %v99 = vld [vmem:[%s0] sm:$0xff]
    %v100 = vld [vmem:[%s0 + $0x8] sm:$0xff]
    %v101 = vld [vmem:[%s0 + $0x10] sm:$0xff]
    %v102 = vld [vmem:[%s0 + $0x18] sm:$0xff]
    %v103 = vld [vmem:[%s0 + $0x20] sm:$0xff]
    %v104 = vld [vmem:[%s0 + $0x28] sm:$0xff]
    %v105 = vld [vmem:[%s0 + $0x30] sm:$0xff]
    %v106 = vld [vmem:[%s0 + $0x38] sm:$0xff]
    %v107 = vpack.c.bf16 %v100, %v99
    %v108 = vpack.c.bf16 %v102, %v101
    %v109 = vpack.c.bf16 %v104, %v103
    %v110 = vpack.c.bf16 %v106, %v105
    %v111 = vld [vmem:[#allocation3] sm:$0xff]
    %v112 = vld [vmem:[#allocation3 + $0x8] sm:$0xff]
    %v113 = vld [vmem:[#allocation3 + $0x10] sm:$0xff]
    %v114 = vld [vmem:[#allocation3 + $0x18] sm:$0xff]
    %v115 = vld [vmem:[#allocation3 + $0x20] sm:$0xff]
    %v116 = vld [vmem:[#allocation3 + $0x28] sm:$0xff]
    %v117 = vld [vmem:[#allocation3 + $0x30] sm:$0xff]
    %v118 = vld [vmem:[#allocation3 + $0x38] sm:$0xff]
    %v119 = vld [vmem:[#allocation3 + $0x40] sm:$0xff]
    %v120 = vld [vmem:[#allocation3 + $0x48] sm:$0xff]
    %v121 = vld [vmem:[#allocation3 + $0x50] sm:$0xff]
    %v122 = vld [vmem:[#allocation3 + $0x58] sm:$0xff]
    %v123 = vld [vmem:[#allocation3 + $0x60] sm:$0xff]
    %v124 = vld [vmem:[#allocation3 + $0x68] sm:$0xff]
    %v125 = vld [vmem:[#allocation3 + $0x70] sm:$0xff]
    %v126 = vld [vmem:[#allocation3 + $0x78] sm:$0xff]
    %v127 = vld [vmem:[#allocation3 + $0x80] sm:$0xff]
    %v128 = vld [vmem:[#allocation3 + $0x88] sm:$0xff]
    %v129 = vld [vmem:[#allocation3 + $0x90] sm:$0xff]
    %v130 = vld [vmem:[#allocation3 + $0x98] sm:$0xff]
    %v131 = vld [vmem:[#allocation3 + $0xa0] sm:$0xff]
    %v132 = vld [vmem:[#allocation3 + $0xa8] sm:$0xff]
    %v133 = vld [vmem:[#allocation3 + $0xb0] sm:$0xff]
    %v134 = vld [vmem:[#allocation3 + $0xb8] sm:$0xff]
    %v135 = vld [vmem:[#allocation3 + $0xc0] sm:$0xff]
    %v136 = vld [vmem:[#allocation3 + $0xc8] sm:$0xff]
    %v137 = vld [vmem:[#allocation3 + $0xd0] sm:$0xff]
    %v138 = vld [vmem:[#allocation3 + $0xd8] sm:$0xff]
    %v139 = vld [vmem:[#allocation3 + $0xe0] sm:$0xff]
    %v140 = vld [vmem:[#allocation3 + $0xe8] sm:$0xff]
    %v141 = vld [vmem:[#allocation3 + $0xf0] sm:$0xff]
    %v142 = vld [vmem:[#allocation3 + $0xf8] sm:$0xff]
    %v143 = vld [vmem:[%s2] sm:$0xf]
    %v145 = vlaneseq
    %v146 = vshrl.u32 %v145, 7
    %v147 = vsub.s32 0, %v146
    %v148 = vrot.slane %v143, %v147
    %v149 = vlaneseq
    %v150 = vshrl.u32 %v149, 7
    %v151 = vsub.s32 1, %v150
    %v152 = vrot.slane %v143, %v151
    %v153 = vlaneseq
    %v154 = vshrl.u32 %v153, 7
    %v155 = vsub.s32 2, %v154
    %v156 = vrot.slane %v143, %v155
    %v157 = vlaneseq
    %v158 = vshrl.u32 %v157, 7
    %v159 = vsub.s32 3, %v158
    %v160 = vrot.slane %v143, %v159
    %v197 = vunpack.c.l.b16 %v111
    %v198 = vunpack.c.h.b16 %v111
    %v199 = vunpack.c.l.b16 %v112
    %v200 = vunpack.c.h.b16 %v112
    %v201 = vunpack.c.l.b16 %v113
    %v202 = vunpack.c.h.b16 %v113
    %v203 = vunpack.c.l.b16 %v114
    %v204 = vunpack.c.h.b16 %v114
    %v205 = vunpack.c.l.b16 %v115
    %v206 = vunpack.c.h.b16 %v115
    %v207 = vunpack.c.l.b16 %v116
    %v208 = vunpack.c.h.b16 %v116
    %v209 = vunpack.c.l.b16 %v117
    %v210 = vunpack.c.h.b16 %v117
    %v211 = vunpack.c.l.b16 %v118
    %v212 = vunpack.c.h.b16 %v118
    %v213 = vunpack.c.l.b16 %v119
    %v214 = vunpack.c.h.b16 %v119
    %v215 = vunpack.c.l.b16 %v120
    %v216 = vunpack.c.h.b16 %v120
    %v217 = vunpack.c.l.b16 %v121
    %v218 = vunpack.c.h.b16 %v121
    %v219 = vunpack.c.l.b16 %v122
    %v220 = vunpack.c.h.b16 %v122
    %v221 = vunpack.c.l.b16 %v123
    %v222 = vunpack.c.h.b16 %v123
    %v223 = vunpack.c.l.b16 %v124
    %v224 = vunpack.c.h.b16 %v124
    %v225 = vunpack.c.l.b16 %v125
    %v226 = vunpack.c.h.b16 %v125
    %v227 = vunpack.c.l.b16 %v126
    %v228 = vunpack.c.h.b16 %v126
    %v229 = vunpack.c.l.b16 %v127
    %v230 = vunpack.c.h.b16 %v127
    %v231 = vunpack.c.l.b16 %v128
    %v232 = vunpack.c.h.b16 %v128
    %v233 = vunpack.c.l.b16 %v129
    %v234 = vunpack.c.h.b16 %v129
    %v235 = vunpack.c.l.b16 %v130
    %v236 = vunpack.c.h.b16 %v130
    %v237 = vunpack.c.l.b16 %v131
    %v238 = vunpack.c.h.b16 %v131
    %v239 = vunpack.c.l.b16 %v132
    %v240 = vunpack.c.h.b16 %v132
    %v241 = vunpack.c.l.b16 %v133
    %v242 = vunpack.c.h.b16 %v133
    %v243 = vunpack.c.l.b16 %v134
    %v244 = vunpack.c.h.b16 %v134
    %v245 = vunpack.c.l.b16 %v135
    %v246 = vunpack.c.h.b16 %v135
    %v247 = vunpack.c.l.b16 %v136
    %v248 = vunpack.c.h.b16 %v136
    %v249 = vunpack.c.l.b16 %v137
    %v250 = vunpack.c.h.b16 %v137
    %v251 = vunpack.c.l.b16 %v138
    %v252 = vunpack.c.h.b16 %v138
    %v253 = vunpack.c.l.b16 %v139
    %v254 = vunpack.c.h.b16 %v139
    %v255 = vunpack.c.l.b16 %v140
    %v256 = vunpack.c.h.b16 %v140
    %v257 = vunpack.c.l.b16 %v141
    %v258 = vunpack.c.h.b16 %v141
    %v259 = vunpack.c.l.b16 %v142
    %v260 = vunpack.c.h.b16 %v142
    %v261 = vpack.c.b16 %v201, %v197
    %v262 = vpack.c.b16 %v202, %v198
    %v263 = vpack.c.b16 %v203, %v199
    %v264 = vpack.c.b16 %v204, %v200
    %v265 = vpack.c.b16 %v209, %v205
    %v266 = vpack.c.b16 %v210, %v206
    %v267 = vpack.c.b16 %v211, %v207
    %v268 = vpack.c.b16 %v212, %v208
    %v269 = vpack.c.b16 %v217, %v213
    %v270 = vpack.c.b16 %v218, %v214
    %v271 = vpack.c.b16 %v219, %v215
    %v272 = vpack.c.b16 %v220, %v216
    %v273 = vpack.c.b16 %v225, %v221
    %v274 = vpack.c.b16 %v226, %v222
    %v275 = vpack.c.b16 %v227, %v223
    %v276 = vpack.c.b16 %v228, %v224
    %v277 = vpack.c.b16 %v233, %v229
    %v278 = vpack.c.b16 %v234, %v230
    %v279 = vpack.c.b16 %v235, %v231
    %v280 = vpack.c.b16 %v236, %v232
    %v281 = vpack.c.b16 %v241, %v237
    %v282 = vpack.c.b16 %v242, %v238
    %v283 = vpack.c.b16 %v243, %v239
    %v284 = vpack.c.b16 %v244, %v240
    %v285 = vpack.c.b16 %v249, %v245
    %v286 = vpack.c.b16 %v250, %v246
    %v287 = vpack.c.b16 %v251, %v247
    %v288 = vpack.c.b16 %v252, %v248
    %v289 = vpack.c.b16 %v257, %v253
    %v290 = vpack.c.b16 %v258, %v254
    %v291 = vpack.c.b16 %v259, %v255
    %v292 = vpack.c.b16 %v260, %v256
    %325 = vmatprep.subr.bf16.mxu0 %v262
    %326 = vmatpush1.bf16.msra.mxu0 %v261
    %327 = vmatprep.subr.bf16.mxu0 %v266
    %328 = vmatpush1.bf16.msra.mxu0 %v265
    %329 = vmatprep.subr.bf16.mxu0 %v270
    %330 = vmatpush1.bf16.msra.mxu0 %v269
    %331 = vmatprep.subr.bf16.mxu0 %v274
    %332 = vmatpush1.bf16.msra.mxu0 %v273
    %333 = vmatprep.subr.bf16.mxu0 %v278
    %334 = vmatpush1.bf16.msra.mxu0 %v277
    %335 = vmatprep.subr.bf16.mxu0 %v282
    %336 = vmatpush1.bf16.msra.mxu0 %v281
    %337 = vmatprep.subr.bf16.mxu0 %v286
    %338 = vmatpush1.bf16.msra.mxu0 %v285
    %339 = vmatprep.subr.bf16.mxu0 %v290
    %340 = vmatpush1.bf16.msra.mxu0 %v289
    %341 = vmatprep.subr.bf16.mxu0 0
    %342 = vmatpush1.bf16.msra.mxu0 0
    %343 = vmatprep.subr.bf16.mxu0 0
    %344 = vmatpush1.bf16.msra.mxu0 0
    %345 = vmatprep.subr.bf16.mxu0 0
    %346 = vmatpush1.bf16.msra.mxu0 0
    %347 = vmatprep.subr.bf16.mxu0 0
    %348 = vmatpush1.bf16.msra.mxu0 0
    %349 = vmatprep.subr.bf16.mxu0 0
    %350 = vmatpush1.bf16.msra.mxu0 0
    %351 = vmatprep.subr.bf16.mxu0 0
    %352 = vmatpush1.bf16.msra.mxu0 0
    %353 = vmatprep.subr.bf16.mxu0 0
    %354 = vmatpush1.bf16.msra.mxu0 0
    %355 = vmatprep.subr.bf16.mxu0 0
    %356 = vmatpush1.bf16.msra.mxu0 0
    %357 = vmatprep.mubr.bf16.mxu0 0
    %358 = vmatmul.mubr.bf16.gmra.mrb[0].mxu0 %v107
    %v359 = vpop.f32.mrb[0].mxu0
    %v360 = vadd.f32 %v148, %v359
    %v361 = vpop.f32.mrb[0].mxu0
    %v362 = vadd.f32 %v152, %v361
    %v363 = vpop.f32.mrb[0].mxu0
    %v364 = vadd.f32 %v148, %v363
    %v365 = vpop.f32.mrb[0].mxu0
    %v366 = vadd.f32 %v152, %v365
    %367 = vmatprep.mubr.bf16.mxu0 0
    %368 = vmatmul.mubr.bf16.gmra.mrb[0].mxu0 %v108
    %v369 = vpop.f32.mrb[0].mxu0
    %v370 = vadd.f32 %v148, %v369
    %v371 = vpop.f32.mrb[0].mxu0
    %v372 = vadd.f32 %v152, %v371
    %v373 = vpop.f32.mrb[0].mxu0
    %v374 = vadd.f32 %v148, %v373
    %v375 = vpop.f32.mrb[0].mxu0
    %v376 = vadd.f32 %v152, %v375
    %377 = vmatprep.mubr.bf16.mxu0 0
    %378 = vmatmul.mubr.bf16.gmra.mrb[0].mxu0 %v109
    %v379 = vpop.f32.mrb[0].mxu0
    %v380 = vadd.f32 %v148, %v379
    %v381 = vpop.f32.mrb[0].mxu0
    %v382 = vadd.f32 %v152, %v381
    %v383 = vpop.f32.mrb[0].mxu0
    %v384 = vadd.f32 %v148, %v383
    %v385 = vpop.f32.mrb[0].mxu0
    %v386 = vadd.f32 %v152, %v385
    %387 = vmatprep.mubr.bf16.mxu0 0
    %388 = vmatmul.mubr.bf16.gmra.mrb[0].mxu0 %v110
    %v389 = vpop.f32.mrb[0].mxu0
    %v390 = vadd.f32 %v148, %v389
    %v391 = vpop.f32.mrb[0].mxu0
    %v392 = vadd.f32 %v152, %v391
    %v393 = vpop.f32.mrb[0].mxu0
    %v394 = vadd.f32 %v148, %v393
    %v395 = vpop.f32.mrb[0].mxu0
    %v396 = vadd.f32 %v152, %v395
    %397 = vdwg.mxu0
    %398 = vmatprep.subr.bf16.mxu0 %v264
    %399 = vmatpush1.bf16.msra.mxu0 %v263
    %400 = vmatprep.subr.bf16.mxu0 %v268
    %401 = vmatpush1.bf16.msra.mxu0 %v267
    %402 = vmatprep.subr.bf16.mxu0 %v272
    %403 = vmatpush1.bf16.msra.mxu0 %v271
    %404 = vmatprep.subr.bf16.mxu0 %v276
    %405 = vmatpush1.bf16.msra.mxu0 %v275
    %406 = vmatprep.subr.bf16.mxu0 %v280
    %407 = vmatpush1.bf16.msra.mxu0 %v279
    %408 = vmatprep.subr.bf16.mxu0 %v284
    %409 = vmatpush1.bf16.msra.mxu0 %v283
    %410 = vmatprep.subr.bf16.mxu0 %v288
    %411 = vmatpush1.bf16.msra.mxu0 %v287
    %412 = vmatprep.subr.bf16.mxu0 %v292
    %413 = vmatpush1.bf16.msra.mxu0 %v291
    %414 = vmatprep.subr.bf16.mxu0 0
    %415 = vmatpush1.bf16.msra.mxu0 0
    %416 = vmatprep.subr.bf16.mxu0 0
    %417 = vmatpush1.bf16.msra.mxu0 0
    %418 = vmatprep.subr.bf16.mxu0 0
    %419 = vmatpush1.bf16.msra.mxu0 0
    %420 = vmatprep.subr.bf16.mxu0 0
    %421 = vmatpush1.bf16.msra.mxu0 0
    %422 = vmatprep.subr.bf16.mxu0 0
    %423 = vmatpush1.bf16.msra.mxu0 0
    %424 = vmatprep.subr.bf16.mxu0 0
    %425 = vmatpush1.bf16.msra.mxu0 0
    %426 = vmatprep.subr.bf16.mxu0 0
    %427 = vmatpush1.bf16.msra.mxu0 0
    %428 = vmatprep.subr.bf16.mxu0 0
    %429 = vmatpush1.bf16.msra.mxu0 0
    %430 = vmatprep.mubr.bf16.mxu0 0
    %431 = vmatmul.mubr.bf16.gmra.mrb[0].mxu0 %v107
    %v432 = vpop.f32.mrb[0].mxu0
    %v433 = vadd.f32 %v156, %v432
    %v434 = vpop.f32.mrb[0].mxu0
    %v435 = vadd.f32 %v160, %v434
    %v436 = vpop.f32.mrb[0].mxu0
    %v437 = vadd.f32 %v156, %v436
    %v438 = vpop.f32.mrb[0].mxu0
    %v439 = vadd.f32 %v160, %v438
    %440 = vmatprep.mubr.bf16.mxu0 0
    %441 = vmatmul.mubr.bf16.gmra.mrb[0].mxu0 %v108
    %v442 = vpop.f32.mrb[0].mxu0
    %v443 = vadd.f32 %v156, %v442
    %v444 = vpop.f32.mrb[0].mxu0
    %v445 = vadd.f32 %v160, %v444
    %v446 = vpop.f32.mrb[0].mxu0
    %v447 = vadd.f32 %v156, %v446
    %v448 = vpop.f32.mrb[0].mxu0
    %v449 = vadd.f32 %v160, %v448
    %450 = vmatprep.mubr.bf16.mxu0 0
    %451 = vmatmul.mubr.bf16.gmra.mrb[0].mxu0 %v109
    %v452 = vpop.f32.mrb[0].mxu0
    %v453 = vadd.f32 %v156, %v452
    %v454 = vpop.f32.mrb[0].mxu0
    %v455 = vadd.f32 %v160, %v454
    %v456 = vpop.f32.mrb[0].mxu0
    %v457 = vadd.f32 %v156, %v456
    %v458 = vpop.f32.mrb[0].mxu0
    %v459 = vadd.f32 %v160, %v458
    %460 = vmatprep.mubr.bf16.mxu0 0
    %461 = vmatmul.mubr.bf16.gmra.mrb[0].mxu0 %v110
    %v462 = vpop.f32.mrb[0].mxu0
    %v463 = vadd.f32 %v156, %v462
    %v464 = vpop.f32.mrb[0].mxu0
    %v465 = vadd.f32 %v160, %v464
    %v466 = vpop.f32.mrb[0].mxu0
    %v467 = vadd.f32 %v156, %v466
    %v468 = vpop.f32.mrb[0].mxu0
    %v469 = vadd.f32 %v160, %v468
    %470 = vdwg.mxu0
    %471 = vst [vmem:[#allocation2] sm:$0xff] %v360
    %472 = vst [vmem:[#allocation2 + $0x8] sm:$0xff] %v362
    %473 = vst [vmem:[#allocation2 + $0x10] sm:$0xff] %v433
    %474 = vst [vmem:[#allocation2 + $0x18] sm:$0xff] %v435
    %475 = vst [vmem:[#allocation2 + $0x20] sm:$0xff] %v364
    %476 = vst [vmem:[#allocation2 + $0x28] sm:$0xff] %v366
    %477 = vst [vmem:[#allocation2 + $0x30] sm:$0xff] %v437
    %478 = vst [vmem:[#allocation2 + $0x38] sm:$0xff] %v439
    %479 = vst [vmem:[#allocation2 + $0x40] sm:$0xff] %v370
    %480 = vst [vmem:[#allocation2 + $0x48] sm:$0xff] %v372
    %481 = vst [vmem:[#allocation2 + $0x50] sm:$0xff] %v443
    %482 = vst [vmem:[#allocation2 + $0x58] sm:$0xff] %v445
    %483 = vst [vmem:[#allocation2 + $0x60] sm:$0xff] %v374
    %484 = vst [vmem:[#allocation2 + $0x68] sm:$0xff] %v376
    %485 = vst [vmem:[#allocation2 + $0x70] sm:$0xff] %v447
    %486 = vst [vmem:[#allocation2 + $0x78] sm:$0xff] %v449
    %487 = vst [vmem:[#allocation2 + $0x80] sm:$0xff] %v380
    %488 = vst [vmem:[#allocation2 + $0x88] sm:$0xff] %v382
    %489 = vst [vmem:[#allocation2 + $0x90] sm:$0xff] %v453
    %490 = vst [vmem:[#allocation2 + $0x98] sm:$0xff] %v455
    %491 = vst [vmem:[#allocation2 + $0xa0] sm:$0xff] %v384
    %492 = vst [vmem:[#allocation2 + $0xa8] sm:$0xff] %v386
    %493 = vst [vmem:[#allocation2 + $0xb0] sm:$0xff] %v457
    %494 = vst [vmem:[#allocation2 + $0xb8] sm:$0xff] %v459
    %495 = vst [vmem:[#allocation2 + $0xc0] sm:$0xff] %v390
    %496 = vst [vmem:[#allocation2 + $0xc8] sm:$0xff] %v392
    %497 = vst [vmem:[#allocation2 + $0xd0] sm:$0xff] %v463
    %498 = vst [vmem:[#allocation2 + $0xd8] sm:$0xff] %v465
    %499 = vst [vmem:[#allocation2 + $0xe0] sm:$0xff] %v394
    %500 = vst [vmem:[#allocation2 + $0xe8] sm:$0xff] %v396
    %501 = vst [vmem:[#allocation2 + $0xf0] sm:$0xff] %v467
    %502 = vst [vmem:[#allocation2 + $0xf8] sm:$0xff] %v469
    %v503 = vld [vmem:[#allocation8] sm:$0xff]
    %v504 = vld [vmem:[#allocation8 + $0x8] sm:$0xff]
    %v505 = vld [vmem:[#allocation8 + $0x10] sm:$0xff]
    %v506 = vld [vmem:[#allocation8 + $0x18] sm:$0xff]
    %v507 = vld [vmem:[#allocation8 + $0x20] sm:$0xff]
    %v508 = vld [vmem:[#allocation8 + $0x28] sm:$0xff]
    %v509 = vld [vmem:[#allocation8 + $0x30] sm:$0xff]
    %v510 = vld [vmem:[#allocation8 + $0x38] sm:$0xff]
    %v511 = vld [vmem:[#allocation8 + $0x40] sm:$0xff]
    %v512 = vld [vmem:[#allocation8 + $0x48] sm:$0xff]
    %v513 = vld [vmem:[#allocation8 + $0x50] sm:$0xff]
    %v514 = vld [vmem:[#allocation8 + $0x58] sm:$0xff]
    %v515 = vld [vmem:[#allocation8 + $0x60] sm:$0xff]
    %v516 = vld [vmem:[#allocation8 + $0x68] sm:$0xff]
    %v517 = vld [vmem:[#allocation8 + $0x70] sm:$0xff]
    %v518 = vld [vmem:[#allocation8 + $0x78] sm:$0xff]
    %v519 = vld [vmem:[#allocation8 + $0x80] sm:$0xff]
    %v520 = vld [vmem:[#allocation8 + $0x88] sm:$0xff]
    %v521 = vld [vmem:[#allocation8 + $0x90] sm:$0xff]
    %v522 = vld [vmem:[#allocation8 + $0x98] sm:$0xff]
    %v523 = vld [vmem:[#allocation8 + $0xa0] sm:$0xff]
    %v524 = vld [vmem:[#allocation8 + $0xa8] sm:$0xff]
    %v525 = vld [vmem:[#allocation8 + $0xb0] sm:$0xff]
    %v526 = vld [vmem:[#allocation8 + $0xb8] sm:$0xff]
    %v527 = vld [vmem:[#allocation8 + $0xc0] sm:$0xff]
    %v528 = vld [vmem:[#allocation8 + $0xc8] sm:$0xff]
    %v529 = vld [vmem:[#allocation8 + $0xd0] sm:$0xff]
    %v530 = vld [vmem:[#allocation8 + $0xd8] sm:$0xff]
    %v531 = vld [vmem:[#allocation8 + $0xe0] sm:$0xff]
    %v532 = vld [vmem:[#allocation8 + $0xe8] sm:$0xff]
    %v533 = vld [vmem:[#allocation8 + $0xf0] sm:$0xff]
    %v534 = vld [vmem:[#allocation8 + $0xf8] sm:$0xff]
    %v535 = vld [vmem:[#allocation2] sm:$0xff]
    %v536 = vld [vmem:[#allocation2 + $0x10] sm:$0xff]
    %v537 = vld [vmem:[#allocation2 + $0x18] sm:$0xff]
    %v538 = vmul.f32 %v535, 0.5
    %v539 = vtanh.pop %v538
    %v540 = vmul.f32 %v539, 0.5
    %v541 = vadd.f32 %v540, 0.5
    %v542 = vtanh.pop %v536
    %v543 = vmul.f32 %v537, 0.5
    %v544 = vtanh.pop %v543
    %v545 = vmul.f32 %v544, 0.5
    %v546 = vadd.f32 %v545, 0.5
    %v547 = vmul.f32 %v541, %v542
    %v548 = vtanh.pop %v547
    %v549 = vmul.f32 %v546, %v548
    %v550 = vld [vmem:[#allocation2 + $0x20] sm:$0xff]
    %v551 = vld [vmem:[#allocation2 + $0x28] sm:$0xff]
    %v552 = vld [vmem:[#allocation2 + $0x30] sm:$0xff]
    %v553 = vld [vmem:[#allocation2 + $0x38] sm:$0xff]
    %v554 = vpack.c.bf16 %v549, %v549
    %v587 = vunpack.c.l.b16 %v503
    %v588 = vunpack.c.h.b16 %v503
    %v589 = vunpack.c.l.b16 %v504
    %v590 = vunpack.c.h.b16 %v504
    %v591 = vunpack.c.l.b16 %v505
    %v592 = vunpack.c.h.b16 %v505
    %v593 = vunpack.c.l.b16 %v506
    %v594 = vunpack.c.h.b16 %v506
    %v595 = vunpack.c.l.b16 %v507
    %v596 = vunpack.c.h.b16 %v507
    %v597 = vunpack.c.l.b16 %v508
    %v598 = vunpack.c.h.b16 %v508
    %v599 = vunpack.c.l.b16 %v509
    %v600 = vunpack.c.h.b16 %v509
    %v601 = vunpack.c.l.b16 %v510
    %v602 = vunpack.c.h.b16 %v510
    %v603 = vunpack.c.l.b16 %v511
    %v604 = vunpack.c.h.b16 %v511
    %v605 = vunpack.c.l.b16 %v512
    %v606 = vunpack.c.h.b16 %v512
    %v607 = vunpack.c.l.b16 %v513
    %v608 = vunpack.c.h.b16 %v513
    %v609 = vunpack.c.l.b16 %v514
    %v610 = vunpack.c.h.b16 %v514
    %v611 = vunpack.c.l.b16 %v515
    %v612 = vunpack.c.h.b16 %v515
    %v613 = vunpack.c.l.b16 %v516
    %v614 = vunpack.c.h.b16 %v516
    %v615 = vunpack.c.l.b16 %v517
    %v616 = vunpack.c.h.b16 %v517
    %v617 = vunpack.c.l.b16 %v518
    %v618 = vunpack.c.h.b16 %v518
    %v619 = vunpack.c.l.b16 %v519
    %v620 = vunpack.c.h.b16 %v519
    %v621 = vunpack.c.l.b16 %v520
    %v622 = vunpack.c.h.b16 %v520
    %v623 = vunpack.c.l.b16 %v521
    %v624 = vunpack.c.h.b16 %v521
    %v625 = vunpack.c.l.b16 %v522
    %v626 = vunpack.c.h.b16 %v522
    %v627 = vunpack.c.l.b16 %v523
    %v628 = vunpack.c.h.b16 %v523
    %v629 = vunpack.c.l.b16 %v524
    %v630 = vunpack.c.h.b16 %v524
    %v631 = vunpack.c.l.b16 %v525
    %v632 = vunpack.c.h.b16 %v525
    %v633 = vunpack.c.l.b16 %v526
    %v634 = vunpack.c.h.b16 %v526
    %v635 = vunpack.c.l.b16 %v527
    %v636 = vunpack.c.h.b16 %v527
    %v637 = vunpack.c.l.b16 %v528
    %v638 = vunpack.c.h.b16 %v528
    %v639 = vunpack.c.l.b16 %v529
    %v640 = vunpack.c.h.b16 %v529
    %v641 = vunpack.c.l.b16 %v530
    %v642 = vunpack.c.h.b16 %v530
    %v643 = vunpack.c.l.b16 %v531
    %v644 = vunpack.c.h.b16 %v531
    %v645 = vunpack.c.l.b16 %v532
    %v646 = vunpack.c.h.b16 %v532
    %v647 = vunpack.c.l.b16 %v533
    %v648 = vunpack.c.h.b16 %v533
    %v649 = vunpack.c.l.b16 %v534
    %v650 = vunpack.c.h.b16 %v534
    %v651 = vpack.c.b16 %v591, %v587
    %v652 = vpack.c.b16 %v592, %v588
    %v653 = vpack.c.b16 %v593, %v589
    %v654 = vpack.c.b16 %v594, %v590
    %v655 = vpack.c.b16 %v599, %v595
    %v656 = vpack.c.b16 %v600, %v596
    %v657 = vpack.c.b16 %v601, %v597
    %v658 = vpack.c.b16 %v602, %v598
    %v659 = vpack.c.b16 %v607, %v603
    %v660 = vpack.c.b16 %v608, %v604
    %v661 = vpack.c.b16 %v609, %v605
    %v662 = vpack.c.b16 %v610, %v606
    %v663 = vpack.c.b16 %v615, %v611
    %v664 = vpack.c.b16 %v616, %v612
    %v665 = vpack.c.b16 %v617, %v613
    %v666 = vpack.c.b16 %v618, %v614
    %v667 = vpack.c.b16 %v623, %v619
    %v668 = vpack.c.b16 %v624, %v620
    %v669 = vpack.c.b16 %v625, %v621
    %v670 = vpack.c.b16 %v626, %v622
    %v671 = vpack.c.b16 %v631, %v627
    %v672 = vpack.c.b16 %v632, %v628
    %v673 = vpack.c.b16 %v633, %v629
    %v674 = vpack.c.b16 %v634, %v630
    %v675 = vpack.c.b16 %v639, %v635
    %v676 = vpack.c.b16 %v640, %v636
    %v677 = vpack.c.b16 %v641, %v637
    %v678 = vpack.c.b16 %v642, %v638
    %v679 = vpack.c.b16 %v647, %v643
    %v680 = vpack.c.b16 %v648, %v644
    %v681 = vpack.c.b16 %v649, %v645
    %v682 = vpack.c.b16 %v650, %v646
    %715 = vmatprep.subr.bf16.mxu0 %v652
    %716 = vmatpush1.bf16.msra.mxu0 %v651
    %717 = vmatprep.subr.bf16.mxu0 %v656
    %718 = vmatpush1.bf16.msra.mxu0 %v655
    %719 = vmatprep.subr.bf16.mxu0 %v660
    %720 = vmatpush1.bf16.msra.mxu0 %v659
    %721 = vmatprep.subr.bf16.mxu0 %v664
    %722 = vmatpush1.bf16.msra.mxu0 %v663
    %723 = vmatprep.subr.bf16.mxu0 %v668
    %724 = vmatpush1.bf16.msra.mxu0 %v667
    %725 = vmatprep.subr.bf16.mxu0 %v672
    %726 = vmatpush1.bf16.msra.mxu0 %v671
    %727 = vmatprep.subr.bf16.mxu0 %v676
    %728 = vmatpush1.bf16.msra.mxu0 %v675
    %729 = vmatprep.subr.bf16.mxu0 %v680
    %730 = vmatpush1.bf16.msra.mxu0 %v679
    %731 = vmatprep.subr.bf16.mxu0 0
    %732 = vmatpush1.bf16.msra.mxu0 0
    %733 = vmatprep.subr.bf16.mxu0 0
    %734 = vmatpush1.bf16.msra.mxu0 0
    %735 = vmatprep.subr.bf16.mxu0 0
    %736 = vmatpush1.bf16.msra.mxu0 0
    %737 = vmatprep.subr.bf16.mxu0 0
    %738 = vmatpush1.bf16.msra.mxu0 0
    %739 = vmatprep.subr.bf16.mxu0 0
    %740 = vmatpush1.bf16.msra.mxu0 0
    %741 = vmatprep.subr.bf16.mxu0 0
    %742 = vmatpush1.bf16.msra.mxu0 0
    %743 = vmatprep.subr.bf16.mxu0 0
    %744 = vmatpush1.bf16.msra.mxu0 0
    %745 = vmatprep.subr.bf16.mxu0 0
    %746 = vmatpush1.bf16.msra.mxu0 0
    %747 = vmatprep.mubr.bf16.mxu0 0
    %748 = vmatmul.mubr.bf16.gmra.mrb[0].mxu0 %v554
    %v749 = vpop.f32.mrb[0].mxu0
    %v750 = vadd.f32 0.0, %v749
    %v751 = vpop.f32.mrb[0].mxu0
    %v752 = vadd.f32 0.0, %v751
    %v753 = vpop.f32.mrb[0].mxu0
    %v754 = vpop.f32.mrb[0].mxu0
    %755 = vdwg.mxu0
    %756 = vmatprep.subr.bf16.mxu0 %v654
    %757 = vmatpush1.bf16.msra.mxu0 %v653
    %758 = vmatprep.subr.bf16.mxu0 %v658
    %759 = vmatpush1.bf16.msra.mxu0 %v657
    %760 = vmatprep.subr.bf16.mxu0 %v662
    %761 = vmatpush1.bf16.msra.mxu0 %v661
    %762 = vmatprep.subr.bf16.mxu0 %v666
    %763 = vmatpush1.bf16.msra.mxu0 %v665
    %764 = vmatprep.subr.bf16.mxu0 %v670
    %765 = vmatpush1.bf16.msra.mxu0 %v669
    %766 = vmatprep.subr.bf16.mxu0 %v674
    %767 = vmatpush1.bf16.msra.mxu0 %v673
    %768 = vmatprep.subr.bf16.mxu0 %v678
    %769 = vmatpush1.bf16.msra.mxu0 %v677
    %770 = vmatprep.subr.bf16.mxu0 %v682
    %771 = vmatpush1.bf16.msra.mxu0 %v681
    %772 = vmatprep.subr.bf16.mxu0 0
    %773 = vmatpush1.bf16.msra.mxu0 0
    %774 = vmatprep.subr.bf16.mxu0 0
    %775 = vmatpush1.bf16.msra.mxu0 0
    %776 = vmatprep.subr.bf16.mxu0 0
    %777 = vmatpush1.bf16.msra.mxu0 0
    %778 = vmatprep.subr.bf16.mxu0 0
    %779 = vmatpush1.bf16.msra.mxu0 0
    %780 = vmatprep.subr.bf16.mxu0 0
    %781 = vmatpush1.bf16.msra.mxu0 0
    %782 = vmatprep.subr.bf16.mxu0 0
    %783 = vmatpush1.bf16.msra.mxu0 0
    %784 = vmatprep.subr.bf16.mxu0 0
    %785 = vmatpush1.bf16.msra.mxu0 0
    %786 = vmatprep.subr.bf16.mxu0 0
    %787 = vmatpush1.bf16.msra.mxu0 0
    %788 = vmatprep.mubr.bf16.mxu0 0
    %789 = vmatmul.mubr.bf16.gmra.mrb[0].mxu0 %v554
    %v790 = vpop.f32.mrb[0].mxu0
    %v791 = vadd.f32 0.0, %v790
    %v792 = vpop.f32.mrb[0].mxu0
    %v793 = vadd.f32 0.0, %v792
    %v794 = vpop.f32.mrb[0].mxu0
    %v795 = vpop.f32.mrb[0].mxu0
    %796 = vdwg.mxu0
    %v797 = vadd.f32 %v550, %v750
    %v798 = vadd.f32 %v551, %v752
    %v799 = vadd.f32 %v552, %v791
    %v800 = vadd.f32 %v553, %v793
    %v801 = vmul.f32 %v797, 0.5
    %v802 = vtanh.pop %v801
    %v803 = vmul.f32 %v802, 0.5
    %v804 = vadd.f32 %v803, 0.5
    %v805 = vmul.f32 %v798, 0.5
    %v806 = vtanh.pop %v805
    %v807 = vmul.f32 %v806, 0.5
    %v808 = vadd.f32 %v807, 0.5
    %v809 = vtanh.pop %v799
    %v810 = vmul.f32 %v800, 0.5
    %v811 = vtanh.pop %v810
    %v812 = vmul.f32 %v811, 0.5
    %v813 = vadd.f32 %v812, 0.5
    %v814 = vmul.f32 %v808, %v547
    %v815 = vmul.f32 %v804, %v809
    %v816 = vadd.f32 %v814, %v815
    %v817 = vtanh.pop %v816
    %v818 = vmul.f32 %v813, %v817
    %v819 = vld [vmem:[#allocation2 + $0x40] sm:$0xff]
    %v820 = vld [vmem:[#allocation2 + $0x48] sm:$0xff]
    %v821 = vld [vmem:[#allocation2 + $0x50] sm:$0xff]
    %v822 = vld [vmem:[#allocation2 + $0x58] sm:$0xff]
    %v823 = vpack.c.bf16 %v818, %v818
    %824 = vmatprep.subr.bf16.mxu0 %v652
    %825 = vmatpush1.bf16.msra.mxu0 %v651
    %826 = vmatprep.subr.bf16.mxu0 %v656
    %827 = vmatpush1.bf16.msra.mxu0 %v655
    %828 = vmatprep.subr.bf16.mxu0 %v660
    %829 = vmatpush1.bf16.msra.mxu0 %v659
    %830 = vmatprep.subr.bf16.mxu0 %v664
    %831 = vmatpush1.bf16.msra.mxu0 %v663
    %832 = vmatprep.subr.bf16.mxu0 %v668
    %833 = vmatpush1.bf16.msra.mxu0 %v667
    %834 = vmatprep.subr.bf16.mxu0 %v672
    %835 = vmatpush1.bf16.msra.mxu0 %v671
    %836 = vmatprep.subr.bf16.mxu0 %v676
    %837 = vmatpush1.bf16.msra.mxu0 %v675
    %838 = vmatprep.subr.bf16.mxu0 %v680
    %839 = vmatpush1.bf16.msra.mxu0 %v679
    %840 = vmatprep.subr.bf16.mxu0 0
    %841 = vmatpush1.bf16.msra.mxu0 0
    %842 = vmatprep.subr.bf16.mxu0 0
    %843 = vmatpush1.bf16.msra.mxu0 0
    %844 = vmatprep.subr.bf16.mxu0 0
    %845 = vmatpush1.bf16.msra.mxu0 0
    %846 = vmatprep.subr.bf16.mxu0 0
    %847 = vmatpush1.bf16.msra.mxu0 0
    %848 = vmatprep.subr.bf16.mxu0 0
    %849 = vmatpush1.bf16.msra.mxu0 0
    %850 = vmatprep.subr.bf16.mxu0 0
    %851 = vmatpush1.bf16.msra.mxu0 0
    %852 = vmatprep.subr.bf16.mxu0 0
    %853 = vmatpush1.bf16.msra.mxu0 0
    %854 = vmatprep.subr.bf16.mxu0 0
    %855 = vmatpush1.bf16.msra.mxu0 0
    %856 = vmatprep.mubr.bf16.mxu0 0
    %857 = vmatmul.mubr.bf16.gmra.mrb[0].mxu0 %v823
    %v858 = vpop.f32.mrb[0].mxu0
    %v859 = vadd.f32 0.0, %v858
    %v860 = vpop.f32.mrb[0].mxu0
    %v861 = vadd.f32 0.0, %v860
    %v862 = vpop.f32.mrb[0].mxu0
    %v863 = vpop.f32.mrb[0].mxu0
    %864 = vdwg.mxu0
    %865 = vmatprep.subr.bf16.mxu0 %v654
    %866 = vmatpush1.bf16.msra.mxu0 %v653
    %867 = vmatprep.subr.bf16.mxu0 %v658
    %868 = vmatpush1.bf16.msra.mxu0 %v657
    %869 = vmatprep.subr.bf16.mxu0 %v662
    %870 = vmatpush1.bf16.msra.mxu0 %v661
    %871 = vmatprep.subr.bf16.mxu0 %v666
    %872 = vmatpush1.bf16.msra.mxu0 %v665
    %873 = vmatprep.subr.bf16.mxu0 %v670
    %874 = vmatpush1.bf16.msra.mxu0 %v669
    %875 = vmatprep.subr.bf16.mxu0 %v674
    %876 = vmatpush1.bf16.msra.mxu0 %v673
    %877 = vmatprep.subr.bf16.mxu0 %v678
    %878 = vmatpush1.bf16.msra.mxu0 %v677
    %879 = vmatprep.subr.bf16.mxu0 %v682
    %880 = vmatpush1.bf16.msra.mxu0 %v681
    %881 = vmatprep.subr.bf16.mxu0 0
    %882 = vmatpush1.bf16.msra.mxu0 0
    %883 = vmatprep.subr.bf16.mxu0 0
    %884 = vmatpush1.bf16.msra.mxu0 0
    %885 = vmatprep.subr.bf16.mxu0 0
    %886 = vmatpush1.bf16.msra.mxu0 0
    %887 = vmatprep.subr.bf16.mxu0 0
    %888 = vmatpush1.bf16.msra.mxu0 0
    %889 = vmatprep.subr.bf16.mxu0 0
    %890 = vmatpush1.bf16.msra.mxu0 0
    %891 = vmatprep.subr.bf16.mxu0 0
    %892 = vmatpush1.bf16.msra.mxu0 0
    %893 = vmatprep.subr.bf16.mxu0 0
    %894 = vmatpush1.bf16.msra.mxu0 0
    %895 = vmatprep.subr.bf16.mxu0 0
    %896 = vmatpush1.bf16.msra.mxu0 0
    %897 = vmatprep.mubr.bf16.mxu0 0
    %898 = vmatmul.mubr.bf16.gmra.mrb[0].mxu0 %v823
    %v899 = vpop.f32.mrb[0].mxu0
    %v900 = vadd.f32 0.0, %v899
    %v901 = vpop.f32.mrb[0].mxu0
    %v902 = vadd.f32 0.0, %v901
    %v903 = vpop.f32.mrb[0].mxu0
    %v904 = vpop.f32.mrb[0].mxu0
    %905 = vdwg.mxu0
    %v906 = vadd.f32 %v819, %v859
    %v907 = vadd.f32 %v820, %v861
    %v908 = vadd.f32 %v821, %v900
    %v909 = vadd.f32 %v822, %v902
    %v910 = vmul.f32 %v906, 0.5
    %v911 = vtanh.pop %v910
    %v912 = vmul.f32 %v911, 0.5
    %v913 = vadd.f32 %v912, 0.5
    %v914 = vmul.f32 %v907, 0.5
    %v915 = vtanh.pop %v914
    %v916 = vmul.f32 %v915, 0.5
    %v917 = vadd.f32 %v916, 0.5
    %v918 = vtanh.pop %v908
    %v919 = vmul.f32 %v909, 0.5
    %v920 = vtanh.pop %v919
    %v921 = vmul.f32 %v920, 0.5
    %v922 = vadd.f32 %v921, 0.5
    %v923 = vmul.f32 %v917, %v816
    %v924 = vmul.f32 %v913, %v918
    %v925 = vadd.f32 %v923, %v924
    %v926 = vtanh.pop %v925
    %v927 = vmul.f32 %v922, %v926
    %v928 = vld [vmem:[#allocation2 + $0x60] sm:$0xff]
    %v929 = vld [vmem:[#allocation2 + $0x68] sm:$0xff]
    %v930 = vld [vmem:[#allocation2 + $0x70] sm:$0xff]
    %v931 = vld [vmem:[#allocation2 + $0x78] sm:$0xff]
    %v932 = vpack.c.bf16 %v927, %v927
    %933 = vmatprep.subr.bf16.mxu0 %v652
    %934 = vmatpush1.bf16.msra.mxu0 %v651
    %935 = vmatprep.subr.bf16.mxu0 %v656
    %936 = vmatpush1.bf16.msra.mxu0 %v655
    %937 = vmatprep.subr.bf16.mxu0 %v660
    %938 = vmatpush1.bf16.msra.mxu0 %v659
    %939 = vmatprep.subr.bf16.mxu0 %v664
    %940 = vmatpush1.bf16.msra.mxu0 %v663
    %941 = vmatprep.subr.bf16.mxu0 %v668
    %942 = vmatpush1.bf16.msra.mxu0 %v667
    %943 = vmatprep.subr.bf16.mxu0 %v672
    %944 = vmatpush1.bf16.msra.mxu0 %v671
    %945 = vmatprep.subr.bf16.mxu0 %v676
    %946 = vmatpush1.bf16.msra.mxu0 %v675
    %947 = vmatprep.subr.bf16.mxu0 %v680
    %948 = vmatpush1.bf16.msra.mxu0 %v679
    %949 = vmatprep.subr.bf16.mxu0 0
    %950 = vmatpush1.bf16.msra.mxu0 0
    %951 = vmatprep.subr.bf16.mxu0 0
    %952 = vmatpush1.bf16.msra.mxu0 0
    %953 = vmatprep.subr.bf16.mxu0 0
    %954 = vmatpush1.bf16.msra.mxu0 0
    %955 = vmatprep.subr.bf16.mxu0 0
    %956 = vmatpush1.bf16.msra.mxu0 0
    %957 = vmatprep.subr.bf16.mxu0 0
    %958 = vmatpush1.bf16.msra.mxu0 0
    %959 = vmatprep.subr.bf16.mxu0 0
    %960 = vmatpush1.bf16.msra.mxu0 0
    %961 = vmatprep.subr.bf16.mxu0 0
    %962 = vmatpush1.bf16.msra.mxu0 0
    %963 = vmatprep.subr.bf16.mxu0 0
    %964 = vmatpush1.bf16.msra.mxu0 0
    %965 = vmatprep.mubr.bf16.mxu0 0
    %966 = vmatmul.mubr.bf16.gmra.mrb[0].mxu0 %v932
    %v967 = vpop.f32.mrb[0].mxu0
    %v968 = vadd.f32 0.0, %v967
    %v969 = vpop.f32.mrb[0].mxu0
    %v970 = vadd.f32 0.0, %v969
    %v971 = vpop.f32.mrb[0].mxu0
    %v972 = vpop.f32.mrb[0].mxu0
    %973 = vdwg.mxu0
    %974 = vmatprep.subr.bf16.mxu0 %v654
    %975 = vmatpush1.bf16.msra.mxu0 %v653
    %976 = vmatprep.subr.bf16.mxu0 %v658
    %977 = vmatpush1.bf16.msra.mxu0 %v657
    %978 = vmatprep.subr.bf16.mxu0 %v662
    %979 = vmatpush1.bf16.msra.mxu0 %v661
    %980 = vmatprep.subr.bf16.mxu0 %v666
    %981 = vmatpush1.bf16.msra.mxu0 %v665
    %982 = vmatprep.subr.bf16.mxu0 %v670
    %983 = vmatpush1.bf16.msra.mxu0 %v669
    %984 = vmatprep.subr.bf16.mxu0 %v674
    %985 = vmatpush1.bf16.msra.mxu0 %v673
    %986 = vmatprep.subr.bf16.mxu0 %v678
    %987 = vmatpush1.bf16.msra.mxu0 %v677
    %988 = vmatprep.subr.bf16.mxu0 %v682
    %989 = vmatpush1.bf16.msra.mxu0 %v681
    %990 = vmatprep.subr.bf16.mxu0 0
    %991 = vmatpush1.bf16.msra.mxu0 0
    %992 = vmatprep.subr.bf16.mxu0 0
    %993 = vmatpush1.bf16.msra.mxu0 0
    %994 = vmatprep.subr.bf16.mxu0 0
    %995 = vmatpush1.bf16.msra.mxu0 0
    %996 = vmatprep.subr.bf16.mxu0 0
    %997 = vmatpush1.bf16.msra.mxu0 0
    %998 = vmatprep.subr.bf16.mxu0 0
    %999 = vmatpush1.bf16.msra.mxu0 0
    %1000 = vmatprep.subr.bf16.mxu0 0
    %1001 = vmatpush1.bf16.msra.mxu0 0
    %1002 = vmatprep.subr.bf16.mxu0 0
    %1003 = vmatpush1.bf16.msra.mxu0 0
    %1004 = vmatprep.subr.bf16.mxu0 0
    %1005 = vmatpush1.bf16.msra.mxu0 0
    %1006 = vmatprep.mubr.bf16.mxu0 0
    %1007 = vmatmul.mubr.bf16.gmra.mrb[0].mxu0 %v932
    %v1008 = vpop.f32.mrb[0].mxu0
    %v1009 = vadd.f32 0.0, %v1008
    %v1010 = vpop.f32.mrb[0].mxu0
    %v1011 = vadd.f32 0.0, %v1010
    %v1012 = vpop.f32.mrb[0].mxu0
    %v1013 = vpop.f32.mrb[0].mxu0
    %1014 = vdwg.mxu0
    %v1015 = vadd.f32 %v928, %v968
    %v1016 = vadd.f32 %v929, %v970
    %v1017 = vadd.f32 %v930, %v1009
    %v1018 = vadd.f32 %v931, %v1011
    %v1019 = vmul.f32 %v1015, 0.5
    %v1020 = vtanh.pop %v1019
    %v1021 = vmul.f32 %v1020, 0.5
    %v1022 = vadd.f32 %v1021, 0.5
    %v1023 = vmul.f32 %v1016, 0.5
    %v1024 = vtanh.pop %v1023
    %v1025 = vmul.f32 %v1024, 0.5
    %v1026 = vadd.f32 %v1025, 0.5
    %v1027 = vtanh.pop %v1017
    %v1028 = vmul.f32 %v1018, 0.5
    %v1029 = vtanh.pop %v1028
    %v1030 = vmul.f32 %v1029, 0.5
    %v1031 = vadd.f32 %v1030, 0.5
    %v1032 = vmul.f32 %v1026, %v925
    %v1033 = vmul.f32 %v1022, %v1027
    %v1034 = vadd.f32 %v1032, %v1033
    %v1035 = vtanh.pop %v1034
    %v1036 = vmul.f32 %v1031, %v1035
    %v1037 = vld [vmem:[#allocation2 + $0x80] sm:$0xff]
    %v1038 = vld [vmem:[#allocation2 + $0x88] sm:$0xff]
    %v1039 = vld [vmem:[#allocation2 + $0x90] sm:$0xff]
    %v1040 = vld [vmem:[#allocation2 + $0x98] sm:$0xff]
    %v1041 = vpack.c.bf16 %v1036, %v1036
    %1042 = vmatprep.subr.bf16.mxu0 %v652
    %1043 = vmatpush1.bf16.msra.mxu0 %v651
    %1044 = vmatprep.subr.bf16.mxu0 %v656
    %1045 = vmatpush1.bf16.msra.mxu0 %v655
    %1046 = vmatprep.subr.bf16.mxu0 %v660
    %1047 = vmatpush1.bf16.msra.mxu0 %v659
    %1048 = vmatprep.subr.bf16.mxu0 %v664
    %1049 = vmatpush1.bf16.msra.mxu0 %v663
    %1050 = vmatprep.subr.bf16.mxu0 %v668
    %1051 = vmatpush1.bf16.msra.mxu0 %v667
    %1052 = vmatprep.subr.bf16.mxu0 %v672
    %1053 = vmatpush1.bf16.msra.mxu0 %v671
    %1054 = vmatprep.subr.bf16.mxu0 %v676
    %1055 = vmatpush1.bf16.msra.mxu0 %v675
    %1056 = vmatprep.subr.bf16.mxu0 %v680
    %1057 = vmatpush1.bf16.msra.mxu0 %v679
    %1058 = vmatprep.subr.bf16.mxu0 0
    %1059 = vmatpush1.bf16.msra.mxu0 0
    %1060 = vmatprep.subr.bf16.mxu0 0
    %1061 = vmatpush1.bf16.msra.mxu0 0
    %1062 = vmatprep.subr.bf16.mxu0 0
    %1063 = vmatpush1.bf16.msra.mxu0 0
    %1064 = vmatprep.subr.bf16.mxu0 0
    %1065 = vmatpush1.bf16.msra.mxu0 0
    %1066 = vmatprep.subr.bf16.mxu0 0
    %1067 = vmatpush1.bf16.msra.mxu0 0
    %1068 = vmatprep.subr.bf16.mxu0 0
    %1069 = vmatpush1.bf16.msra.mxu0 0
    %1070 = vmatprep.subr.bf16.mxu0 0
    %1071 = vmatpush1.bf16.msra.mxu0 0
    %1072 = vmatprep.subr.bf16.mxu0 0
    %1073 = vmatpush1.bf16.msra.mxu0 0
    %1074 = vmatprep.mubr.bf16.mxu0 0
    %1075 = vmatmul.mubr.bf16.gmra.mrb[0].mxu0 %v1041
    %v1076 = vpop.f32.mrb[0].mxu0
    %v1077 = vadd.f32 0.0, %v1076
    %v1078 = vpop.f32.mrb[0].mxu0
    %v1079 = vadd.f32 0.0, %v1078
    %v1080 = vpop.f32.mrb[0].mxu0
    %v1081 = vpop.f32.mrb[0].mxu0
    %1082 = vdwg.mxu0
    %1083 = vmatprep.subr.bf16.mxu0 %v654
    %1084 = vmatpush1.bf16.msra.mxu0 %v653
    %1085 = vmatprep.subr.bf16.mxu0 %v658
    %1086 = vmatpush1.bf16.msra.mxu0 %v657
    %1087 = vmatprep.subr.bf16.mxu0 %v662
    %1088 = vmatpush1.bf16.msra.mxu0 %v661
    %1089 = vmatprep.subr.bf16.mxu0 %v666
    %1090 = vmatpush1.bf16.msra.mxu0 %v665
    %1091 = vmatprep.subr.bf16.mxu0 %v670
    %1092 = vmatpush1.bf16.msra.mxu0 %v669
    %1093 = vmatprep.subr.bf16.mxu0 %v674
    %1094 = vmatpush1.bf16.msra.mxu0 %v673
    %1095 = vmatprep.subr.bf16.mxu0 %v678
    %1096 = vmatpush1.bf16.msra.mxu0 %v677
    %1097 = vmatprep.subr.bf16.mxu0 %v682
    %1098 = vmatpush1.bf16.msra.mxu0 %v681
    %1099 = vmatprep.subr.bf16.mxu0 0
    %1100 = vmatpush1.bf16.msra.mxu0 0
    %1101 = vmatprep.subr.bf16.mxu0 0
    %1102 = vmatpush1.bf16.msra.mxu0 0
    %1103 = vmatprep.subr.bf16.mxu0 0
    %1104 = vmatpush1.bf16.msra.mxu0 0
    %1105 = vmatprep.subr.bf16.mxu0 0
    %1106 = vmatpush1.bf16.msra.mxu0 0
    %1107 = vmatprep.subr.bf16.mxu0 0
    %1108 = vmatpush1.bf16.msra.mxu0 0
    %1109 = vmatprep.subr.bf16.mxu0 0
    %1110 = vmatpush1.bf16.msra.mxu0 0
    %1111 = vmatprep.subr.bf16.mxu0 0
    %1112 = vmatpush1.bf16.msra.mxu0 0
    %1113 = vmatprep.subr.bf16.mxu0 0
    %1114 = vmatpush1.bf16.msra.mxu0 0
    %1115 = vmatprep.mubr.bf16.mxu0 0
    %1116 = vmatmul.mubr.bf16.gmra.mrb[0].mxu0 %v1041
    %v1117 = vpop.f32.mrb[0].mxu0
    %v1118 = vadd.f32 0.0, %v1117
    %v1119 = vpop.f32.mrb[0].mxu0
    %v1120 = vadd.f32 0.0, %v1119
    %v1121 = vpop.f32.mrb[0].mxu0
    %v1122 = vpop.f32.mrb[0].mxu0
    %1123 = vdwg.mxu0
    %v1124 = vadd.f32 %v1037, %v1077
    %v1125 = vadd.f32 %v1038, %v1079
    %v1126 = vadd.f32 %v1039, %v1118
    %v1127 = vadd.f32 %v1040, %v1120
    %v1128 = vmul.f32 %v1124, 0.5
    %v1129 = vtanh.pop %v1128
    %v1130 = vmul.f32 %v1129, 0.5
    %v1131 = vadd.f32 %v1130, 0.5
    %v1132 = vmul.f32 %v1125, 0.5
    %v1133 = vtanh.pop %v1132
    %v1134 = vmul.f32 %v1133, 0.5
    %v1135 = vadd.f32 %v1134, 0.5
    %v1136 = vtanh.pop %v1126
    %v1137 = vmul.f32 %v1127, 0.5
    %v1138 = vtanh.pop %v1137
    %v1139 = vmul.f32 %v1138, 0.5
    %v1140 = vadd.f32 %v1139, 0.5
    %v1141 = vmul.f32 %v1135, %v1034
    %v1142 = vmul.f32 %v1131, %v1136
    %v1143 = vadd.f32 %v1141, %v1142
    %v1144 = vtanh.pop %v1143
    %v1145 = vmul.f32 %v1140, %v1144
    %v1146 = vld [vmem:[#allocation2 + $0xa0] sm:$0xff]
    %v1147 = vld [vmem:[#allocation2 + $0xa8] sm:$0xff]
    %v1148 = vld [vmem:[#allocation2 + $0xb0] sm:$0xff]
    %v1149 = vld [vmem:[#allocation2 + $0xb8] sm:$0xff]
    %v1150 = vpack.c.bf16 %v1145, %v1145
    %1151 = vmatprep.subr.bf16.mxu0 %v652
    %1152 = vmatpush1.bf16.msra.mxu0 %v651
    %1153 = vmatprep.subr.bf16.mxu0 %v656
    %1154 = vmatpush1.bf16.msra.mxu0 %v655
    %1155 = vmatprep.subr.bf16.mxu0 %v660
    %1156 = vmatpush1.bf16.msra.mxu0 %v659
    %1157 = vmatprep.subr.bf16.mxu0 %v664
    %1158 = vmatpush1.bf16.msra.mxu0 %v663
    %1159 = vmatprep.subr.bf16.mxu0 %v668
    %1160 = vmatpush1.bf16.msra.mxu0 %v667
    %1161 = vmatprep.subr.bf16.mxu0 %v672
    %1162 = vmatpush1.bf16.msra.mxu0 %v671
    %1163 = vmatprep.subr.bf16.mxu0 %v676
    %1164 = vmatpush1.bf16.msra.mxu0 %v675
    %1165 = vmatprep.subr.bf16.mxu0 %v680
    %1166 = vmatpush1.bf16.msra.mxu0 %v679
    %1167 = vmatprep.subr.bf16.mxu0 0
    %1168 = vmatpush1.bf16.msra.mxu0 0
    %1169 = vmatprep.subr.bf16.mxu0 0
    %1170 = vmatpush1.bf16.msra.mxu0 0
    %1171 = vmatprep.subr.bf16.mxu0 0
    %1172 = vmatpush1.bf16.msra.mxu0 0
    %1173 = vmatprep.subr.bf16.mxu0 0
    %1174 = vmatpush1.bf16.msra.mxu0 0
    %1175 = vmatprep.subr.bf16.mxu0 0
    %1176 = vmatpush1.bf16.msra.mxu0 0
    %1177 = vmatprep.subr.bf16.mxu0 0
    %1178 = vmatpush1.bf16.msra.mxu0 0
    %1179 = vmatprep.subr.bf16.mxu0 0
    %1180 = vmatpush1.bf16.msra.mxu0 0
    %1181 = vmatprep.subr.bf16.mxu0 0
    %1182 = vmatpush1.bf16.msra.mxu0 0
    %1183 = vmatprep.mubr.bf16.mxu0 0
    %1184 = vmatmul.mubr.bf16.gmra.mrb[0].mxu0 %v1150
    %v1185 = vpop.f32.mrb[0].mxu0
    %v1186 = vadd.f32 0.0, %v1185
    %v1187 = vpop.f32.mrb[0].mxu0
    %v1188 = vadd.f32 0.0, %v1187
    %v1189 = vpop.f32.mrb[0].mxu0
    %v1190 = vpop.f32.mrb[0].mxu0
    %1191 = vdwg.mxu0
    %1192 = vmatprep.subr.bf16.mxu0 %v654
    %1193 = vmatpush1.bf16.msra.mxu0 %v653
    %1194 = vmatprep.subr.bf16.mxu0 %v658
    %1195 = vmatpush1.bf16.msra.mxu0 %v657
    %1196 = vmatprep.subr.bf16.mxu0 %v662
    %1197 = vmatpush1.bf16.msra.mxu0 %v661
    %1198 = vmatprep.subr.bf16.mxu0 %v666
    %1199 = vmatpush1.bf16.msra.mxu0 %v665
    %1200 = vmatprep.subr.bf16.mxu0 %v670
    %1201 = vmatpush1.bf16.msra.mxu0 %v669
    %1202 = vmatprep.subr.bf16.mxu0 %v674
    %1203 = vmatpush1.bf16.msra.mxu0 %v673
    %1204 = vmatprep.subr.bf16.mxu0 %v678
    %1205 = vmatpush1.bf16.msra.mxu0 %v677
    %1206 = vmatprep.subr.bf16.mxu0 %v682
    %1207 = vmatpush1.bf16.msra.mxu0 %v681
    %1208 = vmatprep.subr.bf16.mxu0 0
    %1209 = vmatpush1.bf16.msra.mxu0 0
    %1210 = vmatprep.subr.bf16.mxu0 0
    %1211 = vmatpush1.bf16.msra.mxu0 0
    %1212 = vmatprep.subr.bf16.mxu0 0
    %1213 = vmatpush1.bf16.msra.mxu0 0
    %1214 = vmatprep.subr.bf16.mxu0 0
    %1215 = vmatpush1.bf16.msra.mxu0 0
    %1216 = vmatprep.subr.bf16.mxu0 0
    %1217 = vmatpush1.bf16.msra.mxu0 0
    %1218 = vmatprep.subr.bf16.mxu0 0
    %1219 = vmatpush1.bf16.msra.mxu0 0
    %1220 = vmatprep.subr.bf16.mxu0 0
    %1221 = vmatpush1.bf16.msra.mxu0 0
    %1222 = vmatprep.subr.bf16.mxu0 0
    %1223 = vmatpush1.bf16.msra.mxu0 0
    %1224 = vmatprep.mubr.bf16.mxu0 0
    %1225 = vmatmul.mubr.bf16.gmra.mrb[0].mxu0 %v1150
    %v1226 = vpop.f32.mrb[0].mxu0
    %v1227 = vadd.f32 0.0, %v1226
    %v1228 = vpop.f32.mrb[0].mxu0
    %v1229 = vadd.f32 0.0, %v1228
    %v1230 = vpop.f32.mrb[0].mxu0
    %v1231 = vpop.f32.mrb[0].mxu0
    %1232 = vdwg.mxu0
    %v1233 = vadd.f32 %v1146, %v1186
    %v1234 = vadd.f32 %v1147, %v1188
    %v1235 = vadd.f32 %v1148, %v1227
    %v1236 = vadd.f32 %v1149, %v1229
    %v1237 = vmul.f32 %v1233, 0.5
    %v1238 = vtanh.pop %v1237
    %v1239 = vmul.f32 %v1238, 0.5
    %v1240 = vadd.f32 %v1239, 0.5
    %v1241 = vmul.f32 %v1234, 0.5
    %v1242 = vtanh.pop %v1241
    %v1243 = vmul.f32 %v1242, 0.5
    %v1244 = vadd.f32 %v1243, 0.5
    %v1245 = vtanh.pop %v1235
    %v1246 = vmul.f32 %v1236, 0.5
    %v1247 = vtanh.pop %v1246
    %v1248 = vmul.f32 %v1247, 0.5
    %v1249 = vadd.f32 %v1248, 0.5
    %v1250 = vmul.f32 %v1244, %v1143
    %v1251 = vmul.f32 %v1240, %v1245
    %v1252 = vadd.f32 %v1250, %v1251
    %v1253 = vtanh.pop %v1252
    %v1254 = vmul.f32 %v1249, %v1253
    %v1255 = vld [vmem:[#allocation2 + $0xc0] sm:$0xff]
    %v1256 = vld [vmem:[#allocation2 + $0xc8] sm:$0xff]
    %v1257 = vld [vmem:[#allocation2 + $0xd0] sm:$0xff]
    %v1258 = vld [vmem:[#allocation2 + $0xd8] sm:$0xff]
    %v1259 = vpack.c.bf16 %v1254, %v1254
    %1260 = vmatprep.subr.bf16.mxu0 %v652
    %1261 = vmatpush1.bf16.msra.mxu0 %v651
    %1262 = vmatprep.subr.bf16.mxu0 %v656
    %1263 = vmatpush1.bf16.msra.mxu0 %v655
    %1264 = vmatprep.subr.bf16.mxu0 %v660
    %1265 = vmatpush1.bf16.msra.mxu0 %v659
    %1266 = vmatprep.subr.bf16.mxu0 %v664
    %1267 = vmatpush1.bf16.msra.mxu0 %v663
    %1268 = vmatprep.subr.bf16.mxu0 %v668
    %1269 = vmatpush1.bf16.msra.mxu0 %v667
    %1270 = vmatprep.subr.bf16.mxu0 %v672
    %1271 = vmatpush1.bf16.msra.mxu0 %v671
    %1272 = vmatprep.subr.bf16.mxu0 %v676
    %1273 = vmatpush1.bf16.msra.mxu0 %v675
    %1274 = vmatprep.subr.bf16.mxu0 %v680
    %1275 = vmatpush1.bf16.msra.mxu0 %v679
    %1276 = vmatprep.subr.bf16.mxu0 0
    %1277 = vmatpush1.bf16.msra.mxu0 0
    %1278 = vmatprep.subr.bf16.mxu0 0
    %1279 = vmatpush1.bf16.msra.mxu0 0
    %1280 = vmatprep.subr.bf16.mxu0 0
    %1281 = vmatpush1.bf16.msra.mxu0 0
    %1282 = vmatprep.subr.bf16.mxu0 0
    %1283 = vmatpush1.bf16.msra.mxu0 0
    %1284 = vmatprep.subr.bf16.mxu0 0
    %1285 = vmatpush1.bf16.msra.mxu0 0
    %1286 = vmatprep.subr.bf16.mxu0 0
    %1287 = vmatpush1.bf16.msra.mxu0 0
    %1288 = vmatprep.subr.bf16.mxu0 0
    %1289 = vmatpush1.bf16.msra.mxu0 0
    %1290 = vmatprep.subr.bf16.mxu0 0
    %1291 = vmatpush1.bf16.msra.mxu0 0
    %1292 = vmatprep.mubr.bf16.mxu0 0
    %1293 = vmatmul.mubr.bf16.gmra.mrb[0].mxu0 %v1259
    %v1294 = vpop.f32.mrb[0].mxu0
    %v1295 = vadd.f32 0.0, %v1294
    %v1296 = vpop.f32.mrb[0].mxu0
    %v1297 = vadd.f32 0.0, %v1296
    %v1298 = vpop.f32.mrb[0].mxu0
    %v1299 = vpop.f32.mrb[0].mxu0
    %1300 = vdwg.mxu0
    %1301 = vmatprep.subr.bf16.mxu0 %v654
    %1302 = vmatpush1.bf16.msra.mxu0 %v653
    %1303 = vmatprep.subr.bf16.mxu0 %v658
    %1304 = vmatpush1.bf16.msra.mxu0 %v657
    %1305 = vmatprep.subr.bf16.mxu0 %v662
    %1306 = vmatpush1.bf16.msra.mxu0 %v661
    %1307 = vmatprep.subr.bf16.mxu0 %v666
    %1308 = vmatpush1.bf16.msra.mxu0 %v665
    %1309 = vmatprep.subr.bf16.mxu0 %v670
    %1310 = vmatpush1.bf16.msra.mxu0 %v669
    %1311 = vmatprep.subr.bf16.mxu0 %v674
    %1312 = vmatpush1.bf16.msra.mxu0 %v673
    %1313 = vmatprep.subr.bf16.mxu0 %v678
    %1314 = vmatpush1.bf16.msra.mxu0 %v677
    %1315 = vmatprep.subr.bf16.mxu0 %v682
    %1316 = vmatpush1.bf16.msra.mxu0 %v681
    %1317 = vmatprep.subr.bf16.mxu0 0
    %1318 = vmatpush1.bf16.msra.mxu0 0
    %1319 = vmatprep.subr.bf16.mxu0 0
    %1320 = vmatpush1.bf16.msra.mxu0 0
    %1321 = vmatprep.subr.bf16.mxu0 0
    %1322 = vmatpush1.bf16.msra.mxu0 0
    %1323 = vmatprep.subr.bf16.mxu0 0
    %1324 = vmatpush1.bf16.msra.mxu0 0
    %1325 = vmatprep.subr.bf16.mxu0 0
    %1326 = vmatpush1.bf16.msra.mxu0 0
    %1327 = vmatprep.subr.bf16.mxu0 0
    %1328 = vmatpush1.bf16.msra.mxu0 0
    %1329 = vmatprep.subr.bf16.mxu0 0
    %1330 = vmatpush1.bf16.msra.mxu0 0
    %1331 = vmatprep.subr.bf16.mxu0 0
    %1332 = vmatpush1.bf16.msra.mxu0 0
    %1333 = vmatprep.mubr.bf16.mxu0 0
    %1334 = vmatmul.mubr.bf16.gmra.mrb[0].mxu0 %v1259
    %v1335 = vpop.f32.mrb[0].mxu0
    %v1336 = vadd.f32 0.0, %v1335
    %v1337 = vpop.f32.mrb[0].mxu0
    %v1338 = vadd.f32 0.0, %v1337
    %v1339 = vpop.f32.mrb[0].mxu0
    %v1340 = vpop.f32.mrb[0].mxu0
    %1341 = vdwg.mxu0
    %v1342 = vadd.f32 %v1255, %v1295
    %v1343 = vadd.f32 %v1256, %v1297
    %v1344 = vadd.f32 %v1257, %v1336
    %v1345 = vadd.f32 %v1258, %v1338
    %v1346 = vmul.f32 %v1342, 0.5
    %v1347 = vtanh.pop %v1346
    %v1348 = vmul.f32 %v1347, 0.5
    %v1349 = vadd.f32 %v1348, 0.5
    %v1350 = vmul.f32 %v1343, 0.5
    %v1351 = vtanh.pop %v1350
    %v1352 = vmul.f32 %v1351, 0.5
    %v1353 = vadd.f32 %v1352, 0.5
    %v1354 = vtanh.pop %v1344
    %v1355 = vmul.f32 %v1345, 0.5
    %v1356 = vtanh.pop %v1355
    %v1357 = vmul.f32 %v1356, 0.5
    %v1358 = vadd.f32 %v1357, 0.5
    %v1359 = vmul.f32 %v1353, %v1252
    %v1360 = vmul.f32 %v1349, %v1354
    %v1361 = vadd.f32 %v1359, %v1360
    %v1362 = vtanh.pop %v1361
    %v1363 = vmul.f32 %v1358, %v1362
    %v1364 = vld [vmem:[#allocation2 + $0xe0] sm:$0xff]
    %v1365 = vld [vmem:[#allocation2 + $0xe8] sm:$0xff]
    %v1366 = vld [vmem:[#allocation2 + $0xf0] sm:$0xff]
    %v1367 = vld [vmem:[#allocation2 + $0xf8] sm:$0xff]
    %v1368 = vpack.c.bf16 %v1363, %v1363
    %1369 = vmatprep.subr.bf16.mxu0 %v652
    %1370 = vmatpush1.bf16.msra.mxu0 %v651
    %1371 = vmatprep.subr.bf16.mxu0 %v656
    %1372 = vmatpush1.bf16.msra.mxu0 %v655
    %1373 = vmatprep.subr.bf16.mxu0 %v660
    %1374 = vmatpush1.bf16.msra.mxu0 %v659
    %1375 = vmatprep.subr.bf16.mxu0 %v664
    %1376 = vmatpush1.bf16.msra.mxu0 %v663
    %1377 = vmatprep.subr.bf16.mxu0 %v668
    %1378 = vmatpush1.bf16.msra.mxu0 %v667
    %1379 = vmatprep.subr.bf16.mxu0 %v672
    %1380 = vmatpush1.bf16.msra.mxu0 %v671
    %1381 = vmatprep.subr.bf16.mxu0 %v676
    %1382 = vmatpush1.bf16.msra.mxu0 %v675
    %1383 = vmatprep.subr.bf16.mxu0 %v680
    %1384 = vmatpush1.bf16.msra.mxu0 %v679
    %1385 = vmatprep.subr.bf16.mxu0 0
    %1386 = vmatpush1.bf16.msra.mxu0 0
    %1387 = vmatprep.subr.bf16.mxu0 0
    %1388 = vmatpush1.bf16.msra.mxu0 0
    %1389 = vmatprep.subr.bf16.mxu0 0
    %1390 = vmatpush1.bf16.msra.mxu0 0
    %1391 = vmatprep.subr.bf16.mxu0 0
    %1392 = vmatpush1.bf16.msra.mxu0 0
    %1393 = vmatprep.subr.bf16.mxu0 0
    %1394 = vmatpush1.bf16.msra.mxu0 0
    %1395 = vmatprep.subr.bf16.mxu0 0
    %1396 = vmatpush1.bf16.msra.mxu0 0
    %1397 = vmatprep.subr.bf16.mxu0 0
    %1398 = vmatpush1.bf16.msra.mxu0 0
    %1399 = vmatprep.subr.bf16.mxu0 0
    %1400 = vmatpush1.bf16.msra.mxu0 0
    %1401 = vmatprep.mubr.bf16.mxu0 0
    %1402 = vmatmul.mubr.bf16.gmra.mrb[0].mxu0 %v1368
    %v1403 = vpop.f32.mrb[0].mxu0
    %v1404 = vadd.f32 0.0, %v1403
    %v1405 = vpop.f32.mrb[0].mxu0
    %v1406 = vadd.f32 0.0, %v1405
    %v1407 = vpop.f32.mrb[0].mxu0
    %v1408 = vpop.f32.mrb[0].mxu0
    %1409 = vdwg.mxu0
    %1410 = vmatprep.subr.bf16.mxu0 %v654
    %1411 = vmatpush1.bf16.msra.mxu0 %v653
    %1412 = vmatprep.subr.bf16.mxu0 %v658
    %1413 = vmatpush1.bf16.msra.mxu0 %v657
    %1414 = vmatprep.subr.bf16.mxu0 %v662
    %1415 = vmatpush1.bf16.msra.mxu0 %v661
    %1416 = vmatprep.subr.bf16.mxu0 %v666
    %1417 = vmatpush1.bf16.msra.mxu0 %v665
    %1418 = vmatprep.subr.bf16.mxu0 %v670
    %1419 = vmatpush1.bf16.msra.mxu0 %v669
    %1420 = vmatprep.subr.bf16.mxu0 %v674
    %1421 = vmatpush1.bf16.msra.mxu0 %v673
    %1422 = vmatprep.subr.bf16.mxu0 %v678
    %1423 = vmatpush1.bf16.msra.mxu0 %v677
    %1424 = vmatprep.subr.bf16.mxu0 %v682
    %1425 = vmatpush1.bf16.msra.mxu0 %v681
    %1426 = vmatprep.subr.bf16.mxu0 0
    %1427 = vmatpush1.bf16.msra.mxu0 0
    %1428 = vmatprep.subr.bf16.mxu0 0
    %1429 = vmatpush1.bf16.msra.mxu0 0
    %1430 = vmatprep.subr.bf16.mxu0 0
    %1431 = vmatpush1.bf16.msra.mxu0 0
    %1432 = vmatprep.subr.bf16.mxu0 0
    %1433 = vmatpush1.bf16.msra.mxu0 0
    %1434 = vmatprep.subr.bf16.mxu0 0
    %1435 = vmatpush1.bf16.msra.mxu0 0
    %1436 = vmatprep.subr.bf16.mxu0 0
    %1437 = vmatpush1.bf16.msra.mxu0 0
    %1438 = vmatprep.subr.bf16.mxu0 0
    %1439 = vmatpush1.bf16.msra.mxu0 0
    %1440 = vmatprep.subr.bf16.mxu0 0
    %1441 = vmatpush1.bf16.msra.mxu0 0
    %1442 = vmatprep.mubr.bf16.mxu0 0
    %1443 = vmatmul.mubr.bf16.gmra.mrb[0].mxu0 %v1368
    %v1444 = vpop.f32.mrb[0].mxu0
    %v1445 = vadd.f32 0.0, %v1444
    %v1446 = vpop.f32.mrb[0].mxu0
    %v1447 = vadd.f32 0.0, %v1446
    %v1448 = vpop.f32.mrb[0].mxu0
    %v1449 = vpop.f32.mrb[0].mxu0
    %1450 = vdwg.mxu0
    %v1451 = vadd.f32 %v1364, %v1404
    %v1452 = vadd.f32 %v1365, %v1406
    %v1453 = vadd.f32 %v1366, %v1445
    %v1454 = vadd.f32 %v1367, %v1447
    %v1455 = vmul.f32 %v1451, 0.5
    %v1456 = vtanh.pop %v1455
    %v1457 = vmul.f32 %v1456, 0.5
    %v1458 = vadd.f32 %v1457, 0.5
    %v1459 = vmul.f32 %v1452, 0.5
    %v1460 = vtanh.pop %v1459
    %v1461 = vmul.f32 %v1460, 0.5
    %v1462 = vadd.f32 %v1461, 0.5
    %v1463 = vtanh.pop %v1453
    %v1464 = vmul.f32 %v1454, 0.5
    %v1465 = vtanh.pop %v1464
    %v1466 = vmul.f32 %v1465, 0.5
    %v1467 = vadd.f32 %v1466, 0.5
    %v1468 = vmul.f32 %v1462, %v1361
    %v1469 = vmul.f32 %v1458, %v1463
    %v1470 = vadd.f32 %v1468, %v1469
    %v1471 = vtanh.pop %v1470
    %v1472 = vmul.f32 %v1467, %v1471
    %v1473 = vld [vmem:[#allocation5] sm:$0xff]
    %v1474 = vld [vmem:[#allocation5 + $0x8] sm:$0xff]
    %v1475 = vld [vmem:[#allocation5 + $0x10] sm:$0xff]
    %v1476 = vld [vmem:[#allocation5 + $0x18] sm:$0xff]
    %v1477 = vld [vmem:[#allocation5 + $0x20] sm:$0xff]
    %v1478 = vld [vmem:[#allocation5 + $0x28] sm:$0xff]
    %v1479 = vld [vmem:[#allocation5 + $0x30] sm:$0xff]
    %v1480 = vld [vmem:[#allocation5 + $0x38] sm:$0xff]
    %v1481 = vld [vmem:[#allocation5 + $0x40] sm:$0xff]
    %v1482 = vld [vmem:[#allocation5 + $0x48] sm:$0xff]
    %v1483 = vld [vmem:[#allocation5 + $0x50] sm:$0xff]
    %v1484 = vld [vmem:[#allocation5 + $0x58] sm:$0xff]
    %v1485 = vld [vmem:[#allocation5 + $0x60] sm:$0xff]
    %v1486 = vld [vmem:[#allocation5 + $0x68] sm:$0xff]
    %v1487 = vld [vmem:[#allocation5 + $0x70] sm:$0xff]
    %v1488 = vld [vmem:[#allocation5 + $0x78] sm:$0xff]
    %v1489 = vld [vmem:[#allocation5 + $0x80] sm:$0xff]
    %v1490 = vld [vmem:[#allocation5 + $0x88] sm:$0xff]
    %v1491 = vld [vmem:[#allocation5 + $0x90] sm:$0xff]
    %v1492 = vld [vmem:[#allocation5 + $0x98] sm:$0xff]
    %v1493 = vld [vmem:[#allocation5 + $0xa0] sm:$0xff]
    %v1494 = vld [vmem:[#allocation5 + $0xa8] sm:$0xff]
    %v1495 = vld [vmem:[#allocation5 + $0xb0] sm:$0xff]
    %v1496 = vld [vmem:[#allocation5 + $0xb8] sm:$0xff]
    %v1497 = vld [vmem:[#allocation5 + $0xc0] sm:$0xff]
    %v1498 = vld [vmem:[#allocation5 + $0xc8] sm:$0xff]
    %v1499 = vld [vmem:[#allocation5 + $0xd0] sm:$0xff]
    %v1500 = vld [vmem:[#allocation5 + $0xd8] sm:$0xff]
    %v1501 = vld [vmem:[#allocation5 + $0xe0] sm:$0xff]
    %v1502 = vld [vmem:[#allocation5 + $0xe8] sm:$0xff]
    %v1503 = vld [vmem:[#allocation5 + $0xf0] sm:$0xff]
    %v1504 = vld [vmem:[#allocation5 + $0xf8] sm:$0xff]
    %v1505 = vld [vmem:[#allocation7] sm:$0xf]
    %v1507 = vlaneseq
    %v1508 = vshrl.u32 %v1507, 7
    %v1509 = vsub.s32 0, %v1508
    %v1510 = vrot.slane %v1505, %v1509
    %v1511 = vlaneseq
    %v1512 = vshrl.u32 %v1511, 7
    %v1513 = vsub.s32 2, %v1512
    %v1514 = vrot.slane %v1505, %v1513
    %v1515 = vlaneseq
    %v1516 = vshrl.u32 %v1515, 7
    %v1517 = vsub.s32 3, %v1516
    %v1518 = vrot.slane %v1505, %v1517
    %v1523 = vrot.slane %v110, 4
    %v1557 = vunpack.c.l.b16 %v1473
    %v1558 = vunpack.c.h.b16 %v1473
    %v1559 = vunpack.c.l.b16 %v1474
    %v1560 = vunpack.c.h.b16 %v1474
    %v1561 = vunpack.c.l.b16 %v1475
    %v1562 = vunpack.c.h.b16 %v1475
    %v1563 = vunpack.c.l.b16 %v1476
    %v1564 = vunpack.c.h.b16 %v1476
    %v1565 = vunpack.c.l.b16 %v1477
    %v1566 = vunpack.c.h.b16 %v1477
    %v1567 = vunpack.c.l.b16 %v1478
    %v1568 = vunpack.c.h.b16 %v1478
    %v1569 = vunpack.c.l.b16 %v1479
    %v1570 = vunpack.c.h.b16 %v1479
    %v1571 = vunpack.c.l.b16 %v1480
    %v1572 = vunpack.c.h.b16 %v1480
    %v1573 = vunpack.c.l.b16 %v1481
    %v1574 = vunpack.c.h.b16 %v1481
    %v1575 = vunpack.c.l.b16 %v1482
    %v1576 = vunpack.c.h.b16 %v1482
    %v1577 = vunpack.c.l.b16 %v1483
    %v1578 = vunpack.c.h.b16 %v1483
    %v1579 = vunpack.c.l.b16 %v1484
    %v1580 = vunpack.c.h.b16 %v1484
    %v1581 = vunpack.c.l.b16 %v1485
    %v1582 = vunpack.c.h.b16 %v1485
    %v1583 = vunpack.c.l.b16 %v1486
    %v1584 = vunpack.c.h.b16 %v1486
    %v1585 = vunpack.c.l.b16 %v1487
    %v1586 = vunpack.c.h.b16 %v1487
    %v1587 = vunpack.c.l.b16 %v1488
    %v1588 = vunpack.c.h.b16 %v1488
    %v1589 = vunpack.c.l.b16 %v1489
    %v1590 = vunpack.c.h.b16 %v1489
    %v1591 = vunpack.c.l.b16 %v1490
    %v1592 = vunpack.c.h.b16 %v1490
    %v1593 = vunpack.c.l.b16 %v1491
    %v1594 = vunpack.c.h.b16 %v1491
    %v1595 = vunpack.c.l.b16 %v1492
    %v1596 = vunpack.c.h.b16 %v1492
    %v1597 = vunpack.c.l.b16 %v1493
    %v1598 = vunpack.c.h.b16 %v1493
    %v1599 = vunpack.c.l.b16 %v1494
    %v1600 = vunpack.c.h.b16 %v1494
    %v1601 = vunpack.c.l.b16 %v1495
    %v1602 = vunpack.c.h.b16 %v1495
    %v1603 = vunpack.c.l.b16 %v1496
    %v1604 = vunpack.c.h.b16 %v1496
    %v1605 = vunpack.c.l.b16 %v1497
    %v1606 = vunpack.c.h.b16 %v1497
    %v1607 = vunpack.c.l.b16 %v1498
    %v1608 = vunpack.c.h.b16 %v1498
    %v1609 = vunpack.c.l.b16 %v1499
    %v1610 = vunpack.c.h.b16 %v1499
    %v1611 = vunpack.c.l.b16 %v1500
    %v1612 = vunpack.c.h.b16 %v1500
    %v1613 = vunpack.c.l.b16 %v1501
    %v1614 = vunpack.c.h.b16 %v1501
    %v1615 = vunpack.c.l.b16 %v1502
    %v1616 = vunpack.c.h.b16 %v1502
    %v1617 = vunpack.c.l.b16 %v1503
    %v1618 = vunpack.c.h.b16 %v1503
    %v1619 = vunpack.c.l.b16 %v1504
    %v1620 = vunpack.c.h.b16 %v1504
    %v1621 = vpack.c.b16 %v1561, %v1557
    %v1622 = vpack.c.b16 %v1562, %v1558
    %v1623 = vpack.c.b16 %v1563, %v1559
    %v1624 = vpack.c.b16 %v1564, %v1560
    %v1625 = vpack.c.b16 %v1569, %v1565
    %v1626 = vpack.c.b16 %v1570, %v1566
    %v1627 = vpack.c.b16 %v1571, %v1567
    %v1628 = vpack.c.b16 %v1572, %v1568
    %v1629 = vpack.c.b16 %v1577, %v1573
    %v1630 = vpack.c.b16 %v1578, %v1574
    %v1631 = vpack.c.b16 %v1579, %v1575
    %v1632 = vpack.c.b16 %v1580, %v1576
    %v1633 = vpack.c.b16 %v1585, %v1581
    %v1634 = vpack.c.b16 %v1586, %v1582
    %v1635 = vpack.c.b16 %v1587, %v1583
    %v1636 = vpack.c.b16 %v1588, %v1584
    %v1637 = vpack.c.b16 %v1593, %v1589
    %v1638 = vpack.c.b16 %v1594, %v1590
    %v1639 = vpack.c.b16 %v1595, %v1591
    %v1640 = vpack.c.b16 %v1596, %v1592
    %v1641 = vpack.c.b16 %v1601, %v1597
    %v1642 = vpack.c.b16 %v1602, %v1598
    %v1643 = vpack.c.b16 %v1603, %v1599
    %v1644 = vpack.c.b16 %v1604, %v1600
    %v1645 = vpack.c.b16 %v1609, %v1605
    %v1646 = vpack.c.b16 %v1610, %v1606
    %v1647 = vpack.c.b16 %v1611, %v1607
    %v1648 = vpack.c.b16 %v1612, %v1608
    %v1649 = vpack.c.b16 %v1617, %v1613
    %v1650 = vpack.c.b16 %v1618, %v1614
    %v1651 = vpack.c.b16 %v1619, %v1615
    %v1652 = vpack.c.b16 %v1620, %v1616
    %1685 = vmatprep.subr.bf16.mxu0 %v1622
    %1686 = vmatpush1.bf16.msra.mxu0 %v1621
    %1687 = vmatprep.subr.bf16.mxu0 %v1626
    %1688 = vmatpush1.bf16.msra.mxu0 %v1625
    %1689 = vmatprep.subr.bf16.mxu0 %v1630
    %1690 = vmatpush1.bf16.msra.mxu0 %v1629
    %1691 = vmatprep.subr.bf16.mxu0 %v1634
    %1692 = vmatpush1.bf16.msra.mxu0 %v1633
    %1693 = vmatprep.subr.bf16.mxu0 %v1638
    %1694 = vmatpush1.bf16.msra.mxu0 %v1637
    %1695 = vmatprep.subr.bf16.mxu0 %v1642
    %1696 = vmatpush1.bf16.msra.mxu0 %v1641
    %1697 = vmatprep.subr.bf16.mxu0 %v1646
    %1698 = vmatpush1.bf16.msra.mxu0 %v1645
    %1699 = vmatprep.subr.bf16.mxu0 %v1650
    %1700 = vmatpush1.bf16.msra.mxu0 %v1649
    %1701 = vmatprep.subr.bf16.mxu0 0
    %1702 = vmatpush1.bf16.msra.mxu0 0
    %1703 = vmatprep.subr.bf16.mxu0 0
    %1704 = vmatpush1.bf16.msra.mxu0 0
    %1705 = vmatprep.subr.bf16.mxu0 0
    %1706 = vmatpush1.bf16.msra.mxu0 0
    %1707 = vmatprep.subr.bf16.mxu0 0
    %1708 = vmatpush1.bf16.msra.mxu0 0
    %1709 = vmatprep.subr.bf16.mxu0 0
    %1710 = vmatpush1.bf16.msra.mxu0 0
    %1711 = vmatprep.subr.bf16.mxu0 0
    %1712 = vmatpush1.bf16.msra.mxu0 0
    %1713 = vmatprep.subr.bf16.mxu0 0
    %1714 = vmatpush1.bf16.msra.mxu0 0
    %1715 = vmatprep.subr.bf16.mxu0 0
    %1716 = vmatpush1.bf16.msra.mxu0 0
    %1717 = vmatprep.mubr.bf16.mxu0 0
    %1718 = vmatmul.mubr.bf16.gmra.mrb[0].mxu0 %v1523
    %v1719 = vpop.f32.mrb[0].mxu0
    %v1720 = vadd.f32 %v1510, %v1719
    %v1721 = vpop.f32.mrb[0].mxu0
    %v1722 = vpop.f32.mrb[0].mxu0
    %v1723 = vpop.f32.mrb[0].mxu0
    %1724 = vdwg.mxu0
    %1725 = vmatprep.subr.bf16.mxu0 %v1624
    %1726 = vmatpush1.bf16.msra.mxu0 %v1623
    %1727 = vmatprep.subr.bf16.mxu0 %v1628
    %1728 = vmatpush1.bf16.msra.mxu0 %v1627
    %1729 = vmatprep.subr.bf16.mxu0 %v1632
    %1730 = vmatpush1.bf16.msra.mxu0 %v1631
    %1731 = vmatprep.subr.bf16.mxu0 %v1636
    %1732 = vmatpush1.bf16.msra.mxu0 %v1635
    %1733 = vmatprep.subr.bf16.mxu0 %v1640
    %1734 = vmatpush1.bf16.msra.mxu0 %v1639
    %1735 = vmatprep.subr.bf16.mxu0 %v1644
    %1736 = vmatpush1.bf16.msra.mxu0 %v1643
    %1737 = vmatprep.subr.bf16.mxu0 %v1648
    %1738 = vmatpush1.bf16.msra.mxu0 %v1647
    %1739 = vmatprep.subr.bf16.mxu0 %v1652
    %1740 = vmatpush1.bf16.msra.mxu0 %v1651
    %1741 = vmatprep.subr.bf16.mxu0 0
    %1742 = vmatpush1.bf16.msra.mxu0 0
    %1743 = vmatprep.subr.bf16.mxu0 0
    %1744 = vmatpush1.bf16.msra.mxu0 0
    %1745 = vmatprep.subr.bf16.mxu0 0
    %1746 = vmatpush1.bf16.msra.mxu0 0
    %1747 = vmatprep.subr.bf16.mxu0 0
    %1748 = vmatpush1.bf16.msra.mxu0 0
    %1749 = vmatprep.subr.bf16.mxu0 0
    %1750 = vmatpush1.bf16.msra.mxu0 0
    %1751 = vmatprep.subr.bf16.mxu0 0
    %1752 = vmatpush1.bf16.msra.mxu0 0
    %1753 = vmatprep.subr.bf16.mxu0 0
    %1754 = vmatpush1.bf16.msra.mxu0 0
    %1755 = vmatprep.subr.bf16.mxu0 0
    %1756 = vmatpush1.bf16.msra.mxu0 0
    %1757 = vmatprep.mubr.bf16.mxu0 0
    %1758 = vmatmul.mubr.bf16.gmra.mrb[0].mxu0 %v1523
    %v1759 = vpop.f32.mrb[0].mxu0
    %v1760 = vadd.f32 %v1514, %v1759
    %v1761 = vpop.f32.mrb[0].mxu0
    %v1762 = vadd.f32 %v1518, %v1761
    %v1763 = vpop.f32.mrb[0].mxu0
    %v1764 = vpop.f32.mrb[0].mxu0
    %1765 = vdwg.mxu0
    %v1766 = vmul.f32 %v1720, 0.5
    %v1767 = vtanh.pop %v1766
    %v1768 = vmul.f32 %v1767, 0.5
    %v1769 = vadd.f32 %v1768, 0.5
    %v1770 = vtanh.pop %v1760
    %v1771 = vmul.f32 %v1762, 0.5
    %v1772 = vtanh.pop %v1771
    %v1773 = vmul.f32 %v1772, 0.5
    %v1774 = vadd.f32 %v1773, 0.5
    %v1775 = vmul.f32 %v1769, %v1770
    %v1776 = vtanh.pop %v1775
    %v1777 = vmul.f32 %v1774, %v1776
    %v1778 = vld [vmem:[%s6] sm:$0xff]
    %v1779 = vld [vmem:[%s6 + $0x8] sm:$0xff]
    %v1780 = vld [vmem:[%s6 + $0x10] sm:$0xff]
    %v1781 = vld [vmem:[%s6 + $0x18] sm:$0xff]
    %v1782 = vld [vmem:[%s6 + $0x20] sm:$0xff]
    %v1783 = vld [vmem:[%s6 + $0x28] sm:$0xff]
    %v1784 = vld [vmem:[%s6 + $0x30] sm:$0xff]
    %v1785 = vld [vmem:[%s6 + $0x38] sm:$0xff]
    %v1786 = vld [vmem:[%s6 + $0x40] sm:$0xff]
    %v1787 = vld [vmem:[%s6 + $0x48] sm:$0xff]
    %v1788 = vld [vmem:[%s6 + $0x50] sm:$0xff]
    %v1789 = vld [vmem:[%s6 + $0x58] sm:$0xff]
    %v1790 = vld [vmem:[%s6 + $0x60] sm:$0xff]
    %v1791 = vld [vmem:[%s6 + $0x68] sm:$0xff]
    %v1792 = vld [vmem:[%s6 + $0x70] sm:$0xff]
    %v1793 = vld [vmem:[%s6 + $0x78] sm:$0xff]
    %v1794 = vld [vmem:[#allocation10] sm:$0xff]
    %v1795 = vld [vmem:[#allocation10 + $0x8] sm:$0xff]
    %v1796 = vld [vmem:[#allocation10 + $0x10] sm:$0xff]
    %v1797 = vld [vmem:[#allocation10 + $0x18] sm:$0xff]
    %v1798 = vld [vmem:[#allocation10 + $0x20] sm:$0xff]
    %v1799 = vld [vmem:[#allocation10 + $0x28] sm:$0xff]
    %v1800 = vld [vmem:[#allocation10 + $0x30] sm:$0xff]
    %v1801 = vld [vmem:[#allocation10 + $0x38] sm:$0xff]
    %v1802 = vld [vmem:[#allocation10 + $0x40] sm:$0xff]
    %v1803 = vld [vmem:[#allocation10 + $0x48] sm:$0xff]
    %v1804 = vld [vmem:[#allocation10 + $0x50] sm:$0xff]
    %v1805 = vld [vmem:[#allocation10 + $0x58] sm:$0xff]
    %v1806 = vld [vmem:[#allocation10 + $0x60] sm:$0xff]
    %v1807 = vld [vmem:[#allocation10 + $0x68] sm:$0xff]
    %v1808 = vld [vmem:[#allocation10 + $0x70] sm:$0xff]
    %v1809 = vld [vmem:[#allocation10 + $0x78] sm:$0xff]
    %1810 = vmatprep.subr.mxu0 0.0
    %1811 = vmatpush1.msra.mxu0 %v1794
    %1812 = vmatprep.subr.mxu0 0.0
    %1813 = vmatpush1.msra.mxu0 %v1795
    %1814 = vmatprep.subr.mxu0 0.0
    %1815 = vmatpush1.msra.mxu0 %v1796
    %1816 = vmatprep.subr.mxu0 0.0
    %1817 = vmatpush1.msra.mxu0 %v1797
    %1818 = vmatprep.subr.mxu0 0.0
    %1819 = vmatpush1.msra.mxu0 %v1798
    %1820 = vmatprep.subr.mxu0 0.0
    %1821 = vmatpush1.msra.mxu0 %v1799
    %1822 = vmatprep.subr.mxu0 0.0
    %1823 = vmatpush1.msra.mxu0 %v1800
    %1824 = vmatprep.subr.mxu0 0.0
    %1825 = vmatpush1.msra.mxu0 %v1801
    %1826 = vmatprep.subr.mxu0 0.0
    %1827 = vmatpush1.msra.mxu0 %v1802
    %1828 = vmatprep.subr.mxu0 0.0
    %1829 = vmatpush1.msra.mxu0 %v1803
    %1830 = vmatprep.subr.mxu0 0.0
    %1831 = vmatpush1.msra.mxu0 %v1804
    %1832 = vmatprep.subr.mxu0 0.0
    %1833 = vmatpush1.msra.mxu0 %v1805
    %1834 = vmatprep.subr.mxu0 0.0
    %1835 = vmatpush1.msra.mxu0 %v1806
    %1836 = vmatprep.subr.mxu0 0.0
    %1837 = vmatpush1.msra.mxu0 %v1807
    %1838 = vmatprep.subr.mxu0 0.0
    %1839 = vmatpush1.msra.mxu0 %v1808
    %1840 = vmatprep.subr.mxu0 0.0
    %1841 = vmatpush1.msra.mxu0 %v1809
    %1842 = vmatprep.subr.mxu0 0.0
    %1843 = vmatpush1.msra.mxu0 0.0
    %1844 = vmatprep.subr.mxu0 0.0
    %1845 = vmatpush1.msra.mxu0 0.0
    %1846 = vmatprep.subr.mxu0 0.0
    %1847 = vmatpush1.msra.mxu0 0.0
    %1848 = vmatprep.subr.mxu0 0.0
    %1849 = vmatpush1.msra.mxu0 0.0
    %1850 = vmatprep.subr.mxu0 0.0
    %1851 = vmatpush1.msra.mxu0 0.0
    %1852 = vmatprep.subr.mxu0 0.0
    %1853 = vmatpush1.msra.mxu0 0.0
    %1854 = vmatprep.subr.mxu0 0.0
    %1855 = vmatpush1.msra.mxu0 0.0
    %1856 = vmatprep.subr.mxu0 0.0
    %1857 = vmatpush1.msra.mxu0 0.0
    %1858 = vmatprep.subr.mxu0 0.0
    %1859 = vmatpush1.msra.mxu0 0.0
    %1860 = vmatprep.subr.mxu0 0.0
    %1861 = vmatpush1.msra.mxu0 0.0
    %1862 = vmatprep.subr.mxu0 0.0
    %1863 = vmatpush1.msra.mxu0 0.0
    %1864 = vmatprep.subr.mxu0 0.0
    %1865 = vmatpush1.msra.mxu0 0.0
    %1866 = vmatprep.subr.mxu0 0.0
    %1867 = vmatpush1.msra.mxu0 0.0
    %1868 = vmatprep.subr.mxu0 0.0
    %1869 = vmatpush1.msra.mxu0 0.0
    %1870 = vmatprep.subr.mxu0 0.0
    %1871 = vmatpush1.msra.mxu0 0.0
    %1872 = vmatprep.subr.mxu0 0.0
    %1873 = vmatpush1.msra.mxu0 0.0
    %1874 = vmatprep.mubr.f32.mxu0 0.0
    %1875 = vmatmul.mubr.f32.gmra.mrb[0].mxu0 %v1777
    %v1876 = vpop.f32.mrb[0].mxu0
    %v1877 = vadd.f32 0.0, %v1876
    %v1878 = vpop.f32.mrb[0].mxu0
    %1879 = vdwg.mxu0
    %1880 = vmatprep.subr.mxu0 0.0
    %1881 = vmatpush1.msra.mxu0 %v1778
    %1882 = vmatprep.subr.mxu0 0.0
    %1883 = vmatpush1.msra.mxu0 %v1779
    %1884 = vmatprep.subr.mxu0 0.0
    %1885 = vmatpush1.msra.mxu0 %v1780
    %1886 = vmatprep.subr.mxu0 0.0
    %1887 = vmatpush1.msra.mxu0 %v1781
    %1888 = vmatprep.subr.mxu0 0.0
    %1889 = vmatpush1.msra.mxu0 %v1782
    %1890 = vmatprep.subr.mxu0 0.0
    %1891 = vmatpush1.msra.mxu0 %v1783
    %1892 = vmatprep.subr.mxu0 0.0
    %1893 = vmatpush1.msra.mxu0 %v1784
    %1894 = vmatprep.subr.mxu0 0.0
    %1895 = vmatpush1.msra.mxu0 %v1785
    %1896 = vmatprep.subr.mxu0 0.0
    %1897 = vmatpush1.msra.mxu0 %v1786
    %1898 = vmatprep.subr.mxu0 0.0
    %1899 = vmatpush1.msra.mxu0 %v1787
    %1900 = vmatprep.subr.mxu0 0.0
    %1901 = vmatpush1.msra.mxu0 %v1788
    %1902 = vmatprep.subr.mxu0 0.0
    %1903 = vmatpush1.msra.mxu0 %v1789
    %1904 = vmatprep.subr.mxu0 0.0
    %1905 = vmatpush1.msra.mxu0 %v1790
    %1906 = vmatprep.subr.mxu0 0.0
    %1907 = vmatpush1.msra.mxu0 %v1791
    %1908 = vmatprep.subr.mxu0 0.0
    %1909 = vmatpush1.msra.mxu0 %v1792
    %1910 = vmatprep.subr.mxu0 0.0
    %1911 = vmatpush1.msra.mxu0 %v1793
    %1912 = vmatprep.subr.mxu0 0.0
    %1913 = vmatpush1.msra.mxu0 0.0
    %1914 = vmatprep.subr.mxu0 0.0
    %1915 = vmatpush1.msra.mxu0 0.0
    %1916 = vmatprep.subr.mxu0 0.0
    %1917 = vmatpush1.msra.mxu0 0.0
    %1918 = vmatprep.subr.mxu0 0.0
    %1919 = vmatpush1.msra.mxu0 0.0
    %1920 = vmatprep.subr.mxu0 0.0
    %1921 = vmatpush1.msra.mxu0 0.0
    %1922 = vmatprep.subr.mxu0 0.0
    %1923 = vmatpush1.msra.mxu0 0.0
    %1924 = vmatprep.subr.mxu0 0.0
    %1925 = vmatpush1.msra.mxu0 0.0
    %1926 = vmatprep.subr.mxu0 0.0
    %1927 = vmatpush1.msra.mxu0 0.0
    %1928 = vmatprep.subr.mxu0 0.0
    %1929 = vmatpush1.msra.mxu0 0.0
    %1930 = vmatprep.subr.mxu0 0.0
    %1931 = vmatpush1.msra.mxu0 0.0
    %1932 = vmatprep.subr.mxu0 0.0
    %1933 = vmatpush1.msra.mxu0 0.0
    %1934 = vmatprep.subr.mxu0 0.0
    %1935 = vmatpush1.msra.mxu0 0.0
    %1936 = vmatprep.subr.mxu0 0.0
    %1937 = vmatpush1.msra.mxu0 0.0
    %1938 = vmatprep.subr.mxu0 0.0
    %1939 = vmatpush1.msra.mxu0 0.0
    %1940 = vmatprep.subr.mxu0 0.0
    %1941 = vmatpush1.msra.mxu0 0.0
    %1942 = vmatprep.subr.mxu0 0.0
    %1943 = vmatpush1.msra.mxu0 0.0
    %1944 = vmatprep.mubr.f32.mxu0 0.0
    %1945 = vmatmul.mubr.f32.gmra.mrb[0].mxu0 %v1472
    %v1946 = vpop.f32.mrb[0].mxu0
    %v1947 = vadd.f32 %v1877, %v1946
    %v1948 = vpop.f32.mrb[0].mxu0
    %1949 = vdwg.mxu0
    %v1950 = vld [vmem:[%s8] sm:$0x1]
    %v1952 = vlaneseq
    %v1953 = vshrl.u32 %v1952, 7
    %v1954 = vsub.s32 0, %v1953
    %v1955 = vrot.slane %v1950, %v1954
    %v1957 = vadd.f32 %v1947, %v1955
    %1958 = vst [vmem:[%s9] sm:$0xff] %v1957
    // Predicated region
    $region58: #{spelling_rnn_forward.1} parent=1 // pred_check
      _
    $region59: #{spelling_rnn_forward.1} parent=1 // pred_check_branch
      %1960 = sbr.rel (0) target = $region61
    $region60: #{spelling_rnn_forward.1} parent=1 // pred_region
      _
    $region61: #{spelling_rnn_forward.1} parent=1 // pred_fallthru
      _
    // Predicated region
    $region62: #{spelling_rnn_forward.1} parent=1 // pred_check
      _
    $region63: #{spelling_rnn_forward.1} parent=1 // pred_check_branch
      %1962 = sbr.rel (0) target = $region65
    $region64: #{spelling_rnn_forward.1} parent=1 // pred_region
      _
    $region65: #{spelling_rnn_forward.1} parent=1 // pred_fallthru
      _
    %1963 = vsyncpa [#allocation4], 1
    %1964 = vsyncpa [#allocation6], 1
    %1965 = vsyncpa [#allocation9], 1

</llo_original>
